<compile_context>
chip_gen: v6e
topology: v6e:2x2x1
jax: 0.10.0
libtpu: 0.0.40
codegen_flags: <defaults>
</compile_context>

<pallas_src>
import functools

import jax
import jax.numpy as jnp
from jax import lax
from jax.experimental import pallas as pl
from jax.experimental.pallas import tpu as pltpu


def _round_up(x, m):
    return (x + m - 1) // m * m


def _pick_tile(total, unit, cap):
    """Largest multiple of `unit` dividing `total` and <= cap (falls back to unit)."""
    best = unit
    t = unit
    while t <= min(total, cap):
        if total % t == 0:
            best = t
        t += unit
    return best


# ----------------------------- kernel helpers ---------------------------------
def _build_patches(xa_ref, xb_ref, m_ref, xcat_ref, patch_ref, *,
                   cin, kh, kw, w_img, tq, k, k_pad):
    """Rebuild the (k_pad, tq) im2col patch matrix in VMEM from the flat input."""
    # Stitch the tile and its look-ahead halo into one contiguous f32 buffer.
    xcat_ref[:, :tq] = xa_ref[0].astype(jnp.float32)
    xcat_ref[:, tq:] = xb_ref[0].astype(jnp.float32)
    m_left = m_ref[0:1, :].astype(jnp.float32)     # 0 where w == 0
    m_right = m_ref[1:2, :].astype(jnp.float32)    # 0 where w == W-1
    if k_pad > k:
        patch_ref[k:k_pad, :] = jnp.zeros((k_pad - k, tq), jnp.float32)
    for dy in range(kh):
        for dx in range(kw):
            off = dy * w_img + dx                  # constant shift of this tap
            v = xcat_ref[:, off:off + tq]          # (cin, tq) f32, static slice
            if dx == 0:
                v = v * m_left                     # tap would read column -1
            elif dx == kw - 1:
                v = v * m_right                    # tap would read column W
            row = (dy * kw + dx) * cin
            patch_ref[row:row + cin, :] = v


def _conv_bias_relu(w_ref, b_ref, patch_ref):
    y = jnp.dot(w_ref[...], patch_ref[...], preferred_element_type=jnp.float32)
    return jnp.maximum(y + b_ref[...] - 1.0, 0.0)        # conv bias, -1, ReLU


# ------------------------------ Pallas kernels --------------------------------
def _stats_kernel(xa_ref, xb_ref, w_ref, b_ref, m_ref, stats_ref,
                  xcat_ref, patch_ref, *, cin, kh, kw, w_img, tq, k, k_pad):
    _build_patches(xa_ref, xb_ref, m_ref, xcat_ref, patch_ref,
                   cin=cin, kh=kh, kw=kw, w_img=w_img, tq=tq, k=k, k_pad=k_pad)
    y = _conv_bias_relu(w_ref, b_ref, patch_ref)          # (C_out, tq) f32
    mv = m_ref[2:3, :].astype(jnp.float32)                # valid-pixel mask
    ym = y * mv
    stats_ref[0, 0, :, 0:1] = jnp.sum(ym, axis=1, keepdims=True)
    stats_ref[0, 0, :, 1:2] = jnp.sum(ym * y, axis=1, keepdims=True)


def _norm_kernel(xa_ref, xb_ref, w_ref, b_ref, m_ref, scale_ref, shift_ref,
                 o_ref, xcat_ref, patch_ref, *, cin, kh, kw, w_img, tq, k, k_pad):
    _build_patches(xa_ref, xb_ref, m_ref, xcat_ref, patch_ref,
                   cin=cin, kh=kh, kw=kw, w_img=w_img, tq=tq, k=k, k_pad=k_pad)
    y = _conv_bias_relu(w_ref, b_ref, patch_ref)
    # shift already folds beta - mean*scale - 2, so this is BN + (-2) + ReLU.
    o_ref[0] = jnp.maximum(y * scale_ref[...] + shift_ref[...], 0.0)


# --------------------------------- wrapper -------------------------------------
@jax.jit
def model_forward(x_nchw, conv_w, conv_b, bn_gamma, bn_beta):
    eps = 1e-5
    N, C_in, H, W = x_nchw.shape
    C_out, _, KH, KW = conv_w.shape            # 3x3, stride 1, pad 1
    HW = H * W

    # ---- tiling of the flattened pixel axis ----------------------------------
    HALO = _round_up(2 * W + 2, 128)           # covers the largest tap shift
    Q_PAD = _round_up(HW, HALO)                # lane-dense padded pixel count
    TQ = _pick_tile(Q_PAD, HALO, 2048)
    nb = Q_PAD // TQ
    # v7x has 2 TensorCores: make sure there are >= 2 parallel grid steps.
    if N * nb < 2 and Q_PAD // HALO >= 2:
        TQ = _pick_tile(Q_PAD, HALO, Q_PAD // 2)
        nb = Q_PAD // TQ
    LFLAT = Q_PAD + HALO

    K = KH * KW * C_in
    K_PAD = _round_up(K, 8)

    # ---- flat (row-padded) input stream, bf16 in HBM --------------------------
    # x_flat[n, ci, 1 + (r + 1) * W + w] = x[n, ci, r, w]; everything else 0.
    x_rows = jnp.pad(x_nchw.astype(jnp.bfloat16),
                     ((0, 0), (0, 0), (1, 1), (0, 0)))
    x_flat = x_rows.reshape(N, C_in, (H + 2) * W)
    x_flat = jnp.pad(x_flat, ((0, 0), (0, 0), (1, LFLAT - 1 - (H + 2) * W)))

    # ---- per-pixel border / validity masks (bf16, 3 x Q_PAD) ------------------
    q = jnp.arange(Q_PAD, dtype=jnp.int32)
    col = q % W
    masks = jnp.stack([col != 0,               # dx == 0 tap reads column -1
                       col != (W - 1),         # dx == 2 tap reads column W
                       q < HW],                # real (non-padding) output pixel
                      axis=0).astype(jnp.bfloat16)

    # weight (O, I, kh, kw) -> (O, kh*kw*I) to match patch row ordering (tiny).
    w_lhs = jnp.transpose(conv_w, (0, 2, 3, 1)).reshape(C_out, K)
    w_lhs = jnp.pad(w_lhs, ((0, 0), (0, K_PAD - K))).astype(jnp.float32)
    b_col = conv_b.reshape(C_out, 1).astype(jnp.float32)

    grid = (N, nb)
    xa_spec = pl.BlockSpec((1, C_in, TQ), lambda n, i: (n, 0, i))
    xb_spec = pl.BlockSpec((1, C_in, HALO),
                           lambda n, i: (n, 0, (i + 1) * (TQ // HALO)))
    w_spec = pl.BlockSpec((C_out, K_PAD), lambda n, i: (0, 0))
    b_spec = pl.BlockSpec((C_out, 1), lambda n, i: (0, 0))
    m_spec = pl.BlockSpec((3, TQ), lambda n, i: (0, i))
    scratch = [pltpu.VMEM((C_in, TQ + HALO), jnp.float32),
               pltpu.VMEM((K_PAD, TQ), jnp.float32)]
    cparams = pltpu.CompilerParams(
        dimension_semantics=("parallel", "parallel"),
        vmem_limit_bytes=32 * 1024 * 1024)

    consts = dict(cin=C_in, kh=KH, kw=KW, w_img=W, tq=TQ, k=K, k_pad=K_PAD)
    flops = 2 * N * Q_PAD * K_PAD * C_out
    in_bytes = N * C_in * LFLAT * 2 + 3 * Q_PAD * 2

    # ---- pass 1: per-tile partial per-channel sum / sum of squares ------------
    stats = pl.pallas_call(
        functools.partial(_stats_kernel, **consts),
        out_shape=jax.ShapeDtypeStruct((N, nb, C_out, 2), jnp.float32),
        grid=grid,
        in_specs=[xa_spec, xb_spec, w_spec, b_spec, m_spec],
        out_specs=pl.BlockSpec((1, 1, C_out, 2), lambda n, i: (n, i, 0, 0)),
        scratch_shapes=scratch,
        compiler_params=cparams,
        cost_estimate=pl.CostEstimate(
            flops=flops, transcendentals=0,
            bytes_accessed=in_bytes + N * nb * C_out * 2 * 4),
    )(x_flat, x_flat, w_lhs, b_col, masks)

    # ---- fold BN(training) stats + gamma/beta + (-2) into scale / shift -------
    tot = jnp.sum(stats, axis=(0, 1))                      # (C_out, 2)
    cnt = jnp.float32(N * HW)
    mean = tot[:, 0] / cnt
    var = jnp.maximum(tot[:, 1] / cnt - mean * mean, 0.0)  # biased (training BN)
    inv = lax.rsqrt(var + eps)
    scale = (bn_gamma * inv).reshape(C_out, 1).astype(jnp.float32)
    shift = (bn_beta - mean * bn_gamma * inv - 2.0).reshape(C_out, 1)
    shift = shift.astype(jnp.float32)
    # TODO(synk): nn.BatchNorm2d(training) also updates running_mean/var with
    # momentum; only the forward activations are produced here.

    # ---- pass 2: recompute conv, fused BN/-2/ReLU, lane-dense output ----------
    out = pl.pallas_call(
        functools.partial(_norm_kernel, **consts),
        out_shape=jax.ShapeDtypeStruct((N, C_out, Q_PAD), jnp.float32),
        grid=grid,
        in_specs=[xa_spec, xb_spec, w_spec, b_spec, m_spec, b_spec, b_spec],
        out_specs=pl.BlockSpec((1, C_out, TQ), lambda n, i: (n, 0, i)),
        scratch_shapes=scratch,
        compiler_params=cparams,
        cost_estimate=pl.CostEstimate(
            flops=flops, transcendentals=0,
            bytes_accessed=in_bytes + N * C_out * Q_PAD * 4),
    )(x_flat, x_flat, w_lhs, b_col, masks, scale, shift)

    if Q_PAD != HW:
        out = out[:, :, :HW]
    return out.reshape(N, C_out, H, W)


# -------------------------------- reference ------------------------------------
def reference_forward(x, conv_w, conv_b, gamma, beta, eps=1e-5):
    # Match the kernel's operand precision: bf16 activations, f32 weights/accum.
    xq = x.astype(jnp.bfloat16).astype(jnp.float32)
    y = lax.conv_general_dilated(
        xq, conv_w, window_strides=(1, 1), padding=((1, 1), (1, 1)),
        dimension_numbers=("NCHW", "OIHW", "NCHW"),
        precision=lax.Precision.HIGHEST)
    y = y + conv_b[None, :, None, None]
    y = jnp.maximum(y - 1.0, 0.0)
    mean = jnp.mean(y, axis=(0, 2, 3), keepdims=True)
    var = jnp.var(y, axis=(0, 2, 3), keepdims=True)        # biased (training BN)
    y = (y - mean) / jnp.sqrt(var + eps) * gamma[None, :, None, None] \
        + beta[None, :, None, None]
    return jnp.maximum(y - 2.0, 0.0)


# ---------------------------------- main ----------------------------------------
if __name__ == "__main__":
    key = jax.random.PRNGKey(0)
    k_x, k_w, k_b, k_g, k_be = jax.random.split(key, 5)

    # Module spec: Conv2d(3 -> 8, 3x3, stride 1, pad 1) on a (1, 3, 32, 32) input.
    N, C_in, H, W, C_out = 1, 3, 32, 32, 8

    x = jax.random.normal(k_x, (N, C_in, H, W), dtype=jnp.float32)
    conv_w = 0.2 * jax.random.normal(k_w, (C_out, C_in, 3, 3), dtype=jnp.float32)
    conv_b = 0.1 * jax.random.normal(k_b, (C_out,), dtype=jnp.float32)
    bn_gamma = 1.0 + 0.1 * jax.random.normal(k_g, (C_out,), dtype=jnp.float32)
    bn_beta = 0.1 * jax.random.normal(k_be, (C_out,), dtype=jnp.float32)

    out = jax.block_until_ready(
        model_forward(x, conv_w, conv_b, bn_gamma, bn_beta))
    ref = reference_forward(x, conv_w, conv_b, bn_gamma, bn_beta)

    assert out.shape == (N, C_out, H, W)
    err = float(jnp.max(jnp.abs(out - ref)))
    assert jnp.allclose(out, ref, atol=2e-3, rtol=2e-3), err
    print("KERNEL_OK")
</pallas_src>

<mosaic_0001>
module attributes {stable_mosaic.version = 11 : i64} {
  func.func @_stats_kernel(%arg0: i32, %arg1: i32, %arg2: memref<1x3x512xbf16, #tpu.memory_space<vmem>>, %arg3: memref<1x3x128xbf16, #tpu.memory_space<vmem>>, %arg4: memref<8x32xf32, #tpu.memory_space<vmem>>, %arg5: memref<8x1xf32, #tpu.memory_space<vmem>>, %arg6: memref<3x512xbf16, #tpu.memory_space<vmem>>, %arg7: memref<1x1x8x2xf32, #tpu.memory_space<vmem>>, %arg8: memref<3x640xf32, #tpu.memory_space<vmem>>, %arg9: memref<32x512xf32, #tpu.memory_space<vmem>>) attributes {dimension_semantics = [#tpu.dimension_semantics<parallel>, #tpu.dimension_semantics<parallel>], iteration_bounds = array<i64: 1, 2>, scalar_prefetch = 0 : i64, scratch_operands = 2 : i64, tpu.core_type = #tpu.core_type<tc>, window_params = [{transform_indices = @transform_0, window_bounds = array<i64: 1, 3, 512>}, {transform_indices = @transform_1, window_bounds = array<i64: 1, 3, 128>}, {pipeline_mode = #tpu.pipeline_mode<synchronous>, transform_indices = @transform_2, window_bounds = array<i64: 8, 32>}, {pipeline_mode = #tpu.pipeline_mode<synchronous>, transform_indices = @transform_3, window_bounds = array<i64: 8, 1>}, {transform_indices = @transform_4, window_bounds = array<i64: 3, 512>}, {transform_indices = @transform_5, window_bounds = array<i64: 1, 1, 8, 2>}]} {
    %c0 = arith.constant 0 : index
    %c0_0 = arith.constant 0 : index
    %c0_1 = arith.constant 0 : index
    %0 = vector.load %arg2[%c0, %c0_0, %c0_1] : memref<1x3x512xbf16, #tpu.memory_space<vmem>>, vector<1x3x512xbf16>
    %1 = vector.shape_cast %0 : vector<1x3x512xbf16> to vector<3x512xbf16>
    %2 = arith.extf %1 : vector<3x512xbf16> to vector<3x512xf32>
    %c0_2 = arith.constant 0 : index
    %c0_3 = arith.constant 0 : index
    %3 = vector.load %arg8[%c0_2, %c0_3] : memref<3x640xf32, #tpu.memory_space<vmem>>, vector<3x512xf32>
    tpu.vector_store %arg8[%c0_2, %c0_3], %2 {strides = array<i32>} : memref<3x640xf32, #tpu.memory_space<vmem>>, vector<3x512xf32>,
    %c0_4 = arith.constant 0 : index
    %c0_5 = arith.constant 0 : index
    %c0_6 = arith.constant 0 : index
    %4 = vector.load %arg3[%c0_4, %c0_5, %c0_6] : memref<1x3x128xbf16, #tpu.memory_space<vmem>>, vector<1x3x128xbf16>
    %5 = vector.shape_cast %4 : vector<1x3x128xbf16> to vector<3x128xbf16>
    %6 = arith.extf %5 : vector<3x128xbf16> to vector<3x128xf32>
    %c0_7 = arith.constant 0 : index
    %c512 = arith.constant 512 : index
    %7 = vector.load %arg8[%c0_7, %c512] : memref<3x640xf32, #tpu.memory_space<vmem>>, vector<3x128xf32>
    tpu.vector_store %arg8[%c0_7, %c512], %6 {strides = array<i32>} : memref<3x640xf32, #tpu.memory_space<vmem>>, vector<3x128xf32>,
    %c0_8 = arith.constant 0 : index
    %c0_9 = arith.constant 0 : index
    %8 = vector.load %arg6[%c0_8, %c0_9] : memref<3x512xbf16, #tpu.memory_space<vmem>>, vector<1x512xbf16>
    %9 = arith.extf %8 : vector<1x512xbf16> to vector<1x512xf32>
    %c1 = arith.constant 1 : index
    %c0_10 = arith.constant 0 : index
    %10 = vector.load %arg6[%c1, %c0_10] : memref<3x512xbf16, #tpu.memory_space<vmem>>, vector<1x512xbf16>
    %11 = arith.extf %10 : vector<1x512xbf16> to vector<1x512xf32>
    %cst = arith.constant 0.000000e+00 : f32
    %12 = vector.broadcast %cst : f32 to vector<5x512xf32>
    %c27 = arith.constant 27 : index
    %c0_11 = arith.constant 0 : index
    %13 = vector.load %arg9[%c27, %c0_11] : memref<32x512xf32, #tpu.memory_space<vmem>>, vector<5x512xf32>
    tpu.vector_store %arg9[%c27, %c0_11], %12 {strides = array<i32>} : memref<32x512xf32, #tpu.memory_space<vmem>>, vector<5x512xf32>,
    %c0_12 = arith.constant 0 : index
    %c0_13 = arith.constant 0 : index
    %14 = vector.load %arg8[%c0_12, %c0_13] : memref<3x640xf32, #tpu.memory_space<vmem>>, vector<3x512xf32>
    %15 = vector.broadcast %9 : vector<1x512xf32> to vector<3x512xf32>
    %16 = arith.mulf %14, %15 : vector<3x512xf32>
    %c0_14 = arith.constant 0 : index
    %c0_15 = arith.constant 0 : index
    %17 = vector.load %arg9[%c0_14, %c0_15] : memref<32x512xf32, #tpu.memory_space<vmem>>, vector<3x512xf32>
    tpu.vector_store %arg9[%c0_14, %c0_15], %16 {strides = array<i32>} : memref<32x512xf32, #tpu.memory_space<vmem>>, vector<3x512xf32>,
    %c0_16 = arith.constant 0 : index
    %c1_17 = arith.constant 1 : index
    %18 = vector.load %arg8[%c0_16, %c1_17] : memref<3x640xf32, #tpu.memory_space<vmem>>, vector<3x512xf32>
    %c3 = arith.constant 3 : index
    %c0_18 = arith.constant 0 : index
    %19 = vector.load %arg9[%c3, %c0_18] : memref<32x512xf32, #tpu.memory_space<vmem>>, vector<3x512xf32>
    tpu.vector_store %arg9[%c3, %c0_18], %18 {strides = array<i32>} : memref<32x512xf32, #tpu.memory_space<vmem>>, vector<3x512xf32>,
    %c0_19 = arith.constant 0 : index
    %c2 = arith.constant 2 : index
    %20 = vector.load %arg8[%c0_19, %c2] : memref<3x640xf32, #tpu.memory_space<vmem>>, vector<3x512xf32>
    %21 = vector.broadcast %11 : vector<1x512xf32> to vector<3x512xf32>
    %22 = arith.mulf %20, %21 : vector<3x512xf32>
    %c6 = arith.constant 6 : index
    %c0_20 = arith.constant 0 : index
    %23 = vector.load %arg9[%c6, %c0_20] : memref<32x512xf32, #tpu.memory_space<vmem>>, vector<3x512xf32>
    tpu.vector_store %arg9[%c6, %c0_20], %22 {strides = array<i32>} : memref<32x512xf32, #tpu.memory_space<vmem>>, vector<3x512xf32>,
    %c0_21 = arith.constant 0 : index
    %c32 = arith.constant 32 : index
    %24 = vector.load %arg8[%c0_21, %c32] : memref<3x640xf32, #tpu.memory_space<vmem>>, vector<3x512xf32>
    %25 = vector.broadcast %9 : vector<1x512xf32> to vector<3x512xf32>
    %26 = arith.mulf %24, %25 : vector<3x512xf32>
    %c9 = arith.constant 9 : index
    %c0_22 = arith.constant 0 : index
    %27 = vector.load %arg9[%c9, %c0_22] : memref<32x512xf32, #tpu.memory_space<vmem>>, vector<3x512xf32>
    tpu.vector_store %arg9[%c9, %c0_22], %26 {strides = array<i32>} : memref<32x512xf32, #tpu.memory_space<vmem>>, vector<3x512xf32>,
    %c0_23 = arith.constant 0 : index
    %c33 = arith.constant 33 : index
    %28 = vector.load %arg8[%c0_23, %c33] : memref<3x640xf32, #tpu.memory_space<vmem>>, vector<3x512xf32>
    %c12 = arith.constant 12 : index
    %c0_24 = arith.constant 0 : index
    %29 = vector.load %arg9[%c12, %c0_24] : memref<32x512xf32, #tpu.memory_space<vmem>>, vector<3x512xf32>
    tpu.vector_store %arg9[%c12, %c0_24], %28 {strides = array<i32>} : memref<32x512xf32, #tpu.memory_space<vmem>>, vector<3x512xf32>,
    %c0_25 = arith.constant 0 : index
    %c34 = arith.constant 34 : index
    %30 = vector.load %arg8[%c0_25, %c34] : memref<3x640xf32, #tpu.memory_space<vmem>>, vector<3x512xf32>
    %31 = vector.broadcast %11 : vector<1x512xf32> to vector<3x512xf32>
    %32 = arith.mulf %30, %31 : vector<3x512xf32>
    %c15 = arith.constant 15 : index
    %c0_26 = arith.constant 0 : index
    %33 = vector.load %arg9[%c15, %c0_26] : memref<32x512xf32, #tpu.memory_space<vmem>>, vector<3x512xf32>
    tpu.vector_store %arg9[%c15, %c0_26], %32 {strides = array<i32>} : memref<32x512xf32, #tpu.memory_space<vmem>>, vector<3x512xf32>,
    %c0_27 = arith.constant 0 : index
    %c64 = arith.constant 64 : index
    %34 = vector.load %arg8[%c0_27, %c64] : memref<3x640xf32, #tpu.memory_space<vmem>>, vector<3x512xf32>
    %35 = vector.broadcast %9 : vector<1x512xf32> to vector<3x512xf32>
    %36 = arith.mulf %34, %35 : vector<3x512xf32>
    %c18 = arith.constant 18 : index
    %c0_28 = arith.constant 0 : index
    %37 = vector.load %arg9[%c18, %c0_28] : memref<32x512xf32, #tpu.memory_space<vmem>>, vector<3x512xf32>
    tpu.vector_store %arg9[%c18, %c0_28], %36 {strides = array<i32>} : memref<32x512xf32, #tpu.memory_space<vmem>>, vector<3x512xf32>,
    %c0_29 = arith.constant 0 : index
    %c65 = arith.constant 65 : index
    %38 = vector.load %arg8[%c0_29, %c65] : memref<3x640xf32, #tpu.memory_space<vmem>>, vector<3x512xf32>
    %c21 = arith.constant 21 : index
    %c0_30 = arith.constant 0 : index
    %39 = vector.load %arg9[%c21, %c0_30] : memref<32x512xf32, #tpu.memory_space<vmem>>, vector<3x512xf32>
    tpu.vector_store %arg9[%c21, %c0_30], %38 {strides = array<i32>} : memref<32x512xf32, #tpu.memory_space<vmem>>, vector<3x512xf32>,
    %c0_31 = arith.constant 0 : index
    %c66 = arith.constant 66 : index
    %40 = vector.load %arg8[%c0_31, %c66] : memref<3x640xf32, #tpu.memory_space<vmem>>, vector<3x512xf32>
    %41 = vector.broadcast %11 : vector<1x512xf32> to vector<3x512xf32>
    %42 = arith.mulf %40, %41 : vector<3x512xf32>
    %c24 = arith.constant 24 : index
    %c0_32 = arith.constant 0 : index
    %43 = vector.load %arg9[%c24, %c0_32] : memref<32x512xf32, #tpu.memory_space<vmem>>, vector<3x512xf32>
    tpu.vector_store %arg9[%c24, %c0_32], %42 {strides = array<i32>} : memref<32x512xf32, #tpu.memory_space<vmem>>, vector<3x512xf32>,
    %c0_33 = arith.constant 0 : index
    %c0_34 = arith.constant 0 : index
    %44 = vector.load %arg4[%c0_33, %c0_34] : memref<8x32xf32, #tpu.memory_space<vmem>>, vector<8x32xf32>
    %c0_35 = arith.constant 0 : index
    %c0_36 = arith.constant 0 : index
    %45 = vector.load %arg9[%c0_35, %c0_36] : memref<32x512xf32, #tpu.memory_space<vmem>>, vector<32x512xf32>
    %cst_37 = arith.constant dense<0.000000e+00> : vector<8x512xf32>
    %46 = tpu.matmul %44, %45, %cst_37 {dimension_numbers = #tpu.dot_dimension_numbers<[1], [0], [0], [1], [0, 0, 1, 1], [], []>} : vector<8x32xf32>, vector<32x512xf32>, vector<8x512xf32> -> vector<8x512xf32>
    %c0_38 = arith.constant 0 : index
    %c0_39 = arith.constant 0 : index
    %47 = vector.load %arg5[%c0_38, %c0_39] : memref<8x1xf32, #tpu.memory_space<vmem>>, vector<8x1xf32>
    %48 = vector.broadcast %47 : vector<8x1xf32> to vector<8x512xf32>
    %49 = arith.addf %46, %48 : vector<8x512xf32>
    %cst_40 = arith.constant 1.000000e+00 : f32
    %50 = vector.broadcast %cst_40 : f32 to vector<8x512xf32>
    %51 = arith.subf %49, %50 : vector<8x512xf32>
    %cst_41 = arith.constant 0.000000e+00 : f32
    %52 = vector.broadcast %cst_41 : f32 to vector<8x512xf32>
    %53 = arith.maximumf %51, %52 : vector<8x512xf32>
    %c2_42 = arith.constant 2 : index
    %c0_43 = arith.constant 0 : index
    %54 = vector.load %arg6[%c2_42, %c0_43] : memref<3x512xbf16, #tpu.memory_space<vmem>>, vector<1x512xbf16>
    %55 = arith.extf %54 : vector<1x512xbf16> to vector<1x512xf32>
    %56 = vector.broadcast %55 : vector<1x512xf32> to vector<8x512xf32>
    %57 = arith.mulf %53, %56 : vector<8x512xf32>
    %cst_44 = arith.constant dense<0.000000e+00> : vector<8xf32>
    %58 = vector.multi_reduction <add>, %57, %cst_44 [1] : vector<8x512xf32> to vector<8xf32>
    %59 = vector.shape_cast %58 : vector<8xf32> to vector<8x1xf32>
    %c0_45 = arith.constant 0 : index
    %c0_46 = arith.constant 0 : index
    %c0_47 = arith.constant 0 : index
    %c0_48 = arith.constant 0 : index
    %60 = vector.load %arg7[%c0_45, %c0_46, %c0_47, %c0_48] : memref<1x1x8x2xf32, #tpu.memory_space<vmem>>, vector<1x1x8x1xf32>
    %61 = vector.shape_cast %60 : vector<1x1x8x1xf32> to vector<8x1xf32>
    %62 = vector.shape_cast %59 : vector<8x1xf32> to vector<1x1x8x1xf32>
    tpu.vector_store %arg7[%c0_45, %c0_46, %c0_47, %c0_48], %62 {strides = array<i32>} : memref<1x1x8x2xf32, #tpu.memory_space<vmem>>, vector<1x1x8x1xf32>,
    %63 = arith.mulf %57, %53 : vector<8x512xf32>
    %cst_49 = arith.constant dense<0.000000e+00> : vector<8xf32>
    %64 = vector.multi_reduction <add>, %63, %cst_49 [1] : vector<8x512xf32> to vector<8xf32>
    %65 = vector.shape_cast %64 : vector<8xf32> to vector<8x1xf32>
    %c0_50 = arith.constant 0 : index
    %c0_51 = arith.constant 0 : index
    %c0_52 = arith.constant 0 : index
    %c1_53 = arith.constant 1 : index
    %66 = vector.load %arg7[%c0_50, %c0_51, %c0_52, %c1_53] : memref<1x1x8x2xf32, #tpu.memory_space<vmem>>, vector<1x1x8x1xf32>
    %67 = vector.shape_cast %66 : vector<1x1x8x1xf32> to vector<8x1xf32>
    %68 = vector.shape_cast %65 : vector<8x1xf32> to vector<1x1x8x1xf32>
    tpu.vector_store %arg7[%c0_50, %c0_51, %c0_52, %c1_53], %68 {strides = array<i32>} : memref<1x1x8x2xf32, #tpu.memory_space<vmem>>, vector<1x1x8x1xf32>,
    return
  }
  func.func @transform_0(%arg0: i32, %arg1: i32) -> (i32, i32, i32) {
    %c0_i32 = arith.constant 0 : i32
    %c0_i32_0 = arith.constant 0 : i32
    return %arg0, %c0_i32, %arg1 : i32, i32, i32
  }
  func.func @transform_1(%arg0: i32, %arg1: i32) -> (i32, i32, i32) {
    %c1_i32 = arith.constant 1 : i32
    %0 = arith.addi %arg1, %c1_i32 : i32
    %c4_i32 = arith.constant 4 : i32
    %1 = arith.muli %0, %c4_i32 : i32
    %c0_i32 = arith.constant 0 : i32
    %c0_i32_0 = arith.constant 0 : i32
    return %arg0, %c0_i32, %1 : i32, i32, i32
  }
  func.func @transform_2(%arg0: i32, %arg1: i32) -> (i32, i32) {
    %c0_i32 = arith.constant 0 : i32
    %c0_i32_0 = arith.constant 0 : i32
    %c0_i32_1 = arith.constant 0 : i32
    return %c0_i32, %c0_i32_0 : i32, i32
  }
  func.func @transform_3(%arg0: i32, %arg1: i32) -> (i32, i32) {
    %c0_i32 = arith.constant 0 : i32
    %c0_i32_0 = arith.constant 0 : i32
    %c0_i32_1 = arith.constant 0 : i32
    return %c0_i32, %c0_i32_0 : i32, i32
  }
  func.func @transform_4(%arg0: i32, %arg1: i32) -> (i32, i32) {
    %c0_i32 = arith.constant 0 : i32
    %c0_i32_0 = arith.constant 0 : i32
    return %c0_i32, %arg1 : i32, i32
  }
  func.func @transform_5(%arg0: i32, %arg1: i32) -> (i32, i32, i32, i32) {
    %c0_i32 = arith.constant 0 : i32
    %c0_i32_0 = arith.constant 0 : i32
    %c0_i32_1 = arith.constant 0 : i32
    return %arg0, %arg1, %c0_i32, %c0_i32_0 : i32, i32, i32, i32
  }
}

module attributes {stable_mosaic.version = 11 : i64} {
  func.func @_norm_kernel(%arg0: i32, %arg1: i32, %arg2: memref<1x3x512xbf16, #tpu.memory_space<vmem>>, %arg3: memref<1x3x128xbf16, #tpu.memory_space<vmem>>, %arg4: memref<8x32xf32, #tpu.memory_space<vmem>>, %arg5: memref<8x1xf32, #tpu.memory_space<vmem>>, %arg6: memref<3x512xbf16, #tpu.memory_space<vmem>>, %arg7: memref<8x1xf32, #tpu.memory_space<vmem>>, %arg8: memref<8x1xf32, #tpu.memory_space<vmem>>, %arg9: memref<1x8x512xf32, #tpu.memory_space<vmem>>, %arg10: memref<3x640xf32, #tpu.memory_space<vmem>>, %arg11: memref<32x512xf32, #tpu.memory_space<vmem>>) attributes {dimension_semantics = [#tpu.dimension_semantics<parallel>, #tpu.dimension_semantics<parallel>], iteration_bounds = array<i64: 1, 2>, scalar_prefetch = 0 : i64, scratch_operands = 2 : i64, tpu.core_type = #tpu.core_type<tc>, window_params = [{transform_indices = @transform_0, window_bounds = array<i64: 1, 3, 512>}, {transform_indices = @transform_1, window_bounds = array<i64: 1, 3, 128>}, {pipeline_mode = #tpu.pipeline_mode<synchronous>, transform_indices = @transform_2, window_bounds = array<i64: 8, 32>}, {pipeline_mode = #tpu.pipeline_mode<synchronous>, transform_indices = @transform_3, window_bounds = array<i64: 8, 1>}, {transform_indices = @transform_4, window_bounds = array<i64: 3, 512>}, {pipeline_mode = #tpu.pipeline_mode<synchronous>, transform_indices = @transform_5, window_bounds = array<i64: 8, 1>}, {pipeline_mode = #tpu.pipeline_mode<synchronous>, transform_indices = @transform_6, window_bounds = array<i64: 8, 1>}, {transform_indices = @transform_7, window_bounds = array<i64: 1, 8, 512>}]} {
    %c0 = arith.constant 0 : index
    %c0_0 = arith.constant 0 : index
    %c0_1 = arith.constant 0 : index
    %0 = vector.load %arg2[%c0, %c0_0, %c0_1] : memref<1x3x512xbf16, #tpu.memory_space<vmem>>, vector<1x3x512xbf16>
    %1 = vector.shape_cast %0 : vector<1x3x512xbf16> to vector<3x512xbf16>
    %2 = arith.extf %1 : vector<3x512xbf16> to vector<3x512xf32>
    %c0_2 = arith.constant 0 : index
    %c0_3 = arith.constant 0 : index
    %3 = vector.load %arg10[%c0_2, %c0_3] : memref<3x640xf32, #tpu.memory_space<vmem>>, vector<3x512xf32>
    tpu.vector_store %arg10[%c0_2, %c0_3], %2 {strides = array<i32>} : memref<3x640xf32, #tpu.memory_space<vmem>>, vector<3x512xf32>,
    %c0_4 = arith.constant 0 : index
    %c0_5 = arith.constant 0 : index
    %c0_6 = arith.constant 0 : index
    %4 = vector.load %arg3[%c0_4, %c0_5, %c0_6] : memref<1x3x128xbf16, #tpu.memory_space<vmem>>, vector<1x3x128xbf16>
    %5 = vector.shape_cast %4 : vector<1x3x128xbf16> to vector<3x128xbf16>
    %6 = arith.extf %5 : vector<3x128xbf16> to vector<3x128xf32>
    %c0_7 = arith.constant 0 : index
    %c512 = arith.constant 512 : index
    %7 = vector.load %arg10[%c0_7, %c512] : memref<3x640xf32, #tpu.memory_space<vmem>>, vector<3x128xf32>
    tpu.vector_store %arg10[%c0_7, %c512], %6 {strides = array<i32>} : memref<3x640xf32, #tpu.memory_space<vmem>>, vector<3x128xf32>,
    %c0_8 = arith.constant 0 : index
    %c0_9 = arith.constant 0 : index
    %8 = vector.load %arg6[%c0_8, %c0_9] : memref<3x512xbf16, #tpu.memory_space<vmem>>, vector<1x512xbf16>
    %9 = arith.extf %8 : vector<1x512xbf16> to vector<1x512xf32>
    %c1 = arith.constant 1 : index
    %c0_10 = arith.constant 0 : index
    %10 = vector.load %arg6[%c1, %c0_10] : memref<3x512xbf16, #tpu.memory_space<vmem>>, vector<1x512xbf16>
    %11 = arith.extf %10 : vector<1x512xbf16> to vector<1x512xf32>
    %cst = arith.constant 0.000000e+00 : f32
    %12 = vector.broadcast %cst : f32 to vector<5x512xf32>
    %c27 = arith.constant 27 : index
    %c0_11 = arith.constant 0 : index
    %13 = vector.load %arg11[%c27, %c0_11] : memref<32x512xf32, #tpu.memory_space<vmem>>, vector<5x512xf32>
    tpu.vector_store %arg11[%c27, %c0_11], %12 {strides = array<i32>} : memref<32x512xf32, #tpu.memory_space<vmem>>, vector<5x512xf32>,
    %c0_12 = arith.constant 0 : index
    %c0_13 = arith.constant 0 : index
    %14 = vector.load %arg10[%c0_12, %c0_13] : memref<3x640xf32, #tpu.memory_space<vmem>>, vector<3x512xf32>
    %15 = vector.broadcast %9 : vector<1x512xf32> to vector<3x512xf32>
    %16 = arith.mulf %14, %15 : vector<3x512xf32>
    %c0_14 = arith.constant 0 : index
    %c0_15 = arith.constant 0 : index
    %17 = vector.load %arg11[%c0_14, %c0_15] : memref<32x512xf32, #tpu.memory_space<vmem>>, vector<3x512xf32>
    tpu.vector_store %arg11[%c0_14, %c0_15], %16 {strides = array<i32>} : memref<32x512xf32, #tpu.memory_space<vmem>>, vector<3x512xf32>,
    %c0_16 = arith.constant 0 : index
    %c1_17 = arith.constant 1 : index
    %18 = vector.load %arg10[%c0_16, %c1_17] : memref<3x640xf32, #tpu.memory_space<vmem>>, vector<3x512xf32>
    %c3 = arith.constant 3 : index
    %c0_18 = arith.constant 0 : index
    %19 = vector.load %arg11[%c3, %c0_18] : memref<32x512xf32, #tpu.memory_space<vmem>>, vector<3x512xf32>
    tpu.vector_store %arg11[%c3, %c0_18], %18 {strides = array<i32>} : memref<32x512xf32, #tpu.memory_space<vmem>>, vector<3x512xf32>,
    %c0_19 = arith.constant 0 : index
    %c2 = arith.constant 2 : index
    %20 = vector.load %arg10[%c0_19, %c2] : memref<3x640xf32, #tpu.memory_space<vmem>>, vector<3x512xf32>
    %21 = vector.broadcast %11 : vector<1x512xf32> to vector<3x512xf32>
    %22 = arith.mulf %20, %21 : vector<3x512xf32>
    %c6 = arith.constant 6 : index
    %c0_20 = arith.constant 0 : index
    %23 = vector.load %arg11[%c6, %c0_20] : memref<32x512xf32, #tpu.memory_space<vmem>>, vector<3x512xf32>
    tpu.vector_store %arg11[%c6, %c0_20], %22 {strides = array<i32>} : memref<32x512xf32, #tpu.memory_space<vmem>>, vector<3x512xf32>,
    %c0_21 = arith.constant 0 : index
    %c32 = arith.constant 32 : index
    %24 = vector.load %arg10[%c0_21, %c32] : memref<3x640xf32, #tpu.memory_space<vmem>>, vector<3x512xf32>
    %25 = vector.broadcast %9 : vector<1x512xf32> to vector<3x512xf32>
    %26 = arith.mulf %24, %25 : vector<3x512xf32>
    %c9 = arith.constant 9 : index
    %c0_22 = arith.constant 0 : index
    %27 = vector.load %arg11[%c9, %c0_22] : memref<32x512xf32, #tpu.memory_space<vmem>>, vector<3x512xf32>
    tpu.vector_store %arg11[%c9, %c0_22], %26 {strides = array<i32>} : memref<32x512xf32, #tpu.memory_space<vmem>>, vector<3x512xf32>,
    %c0_23 = arith.constant 0 : index
    %c33 = arith.constant 33 : index
    %28 = vector.load %arg10[%c0_23, %c33] : memref<3x640xf32, #tpu.memory_space<vmem>>, vector<3x512xf32>
    %c12 = arith.constant 12 : index
    %c0_24 = arith.constant 0 : index
    %29 = vector.load %arg11[%c12, %c0_24] : memref<32x512xf32, #tpu.memory_space<vmem>>, vector<3x512xf32>
    tpu.vector_store %arg11[%c12, %c0_24], %28 {strides = array<i32>} : memref<32x512xf32, #tpu.memory_space<vmem>>, vector<3x512xf32>,
    %c0_25 = arith.constant 0 : index
    %c34 = arith.constant 34 : index
    %30 = vector.load %arg10[%c0_25, %c34] : memref<3x640xf32, #tpu.memory_space<vmem>>, vector<3x512xf32>
    %31 = vector.broadcast %11 : vector<1x512xf32> to vector<3x512xf32>
    %32 = arith.mulf %30, %31 : vector<3x512xf32>
    %c15 = arith.constant 15 : index
    %c0_26 = arith.constant 0 : index
    %33 = vector.load %arg11[%c15, %c0_26] : memref<32x512xf32, #tpu.memory_space<vmem>>, vector<3x512xf32>
    tpu.vector_store %arg11[%c15, %c0_26], %32 {strides = array<i32>} : memref<32x512xf32, #tpu.memory_space<vmem>>, vector<3x512xf32>,
    %c0_27 = arith.constant 0 : index
    %c64 = arith.constant 64 : index
    %34 = vector.load %arg10[%c0_27, %c64] : memref<3x640xf32, #tpu.memory_space<vmem>>, vector<3x512xf32>
    %35 = vector.broadcast %9 : vector<1x512xf32> to vector<3x512xf32>
    %36 = arith.mulf %34, %35 : vector<3x512xf32>
    %c18 = arith.constant 18 : index
    %c0_28 = arith.constant 0 : index
    %37 = vector.load %arg11[%c18, %c0_28] : memref<32x512xf32, #tpu.memory_space<vmem>>, vector<3x512xf32>
    tpu.vector_store %arg11[%c18, %c0_28], %36 {strides = array<i32>} : memref<32x512xf32, #tpu.memory_space<vmem>>, vector<3x512xf32>,
    %c0_29 = arith.constant 0 : index
    %c65 = arith.constant 65 : index
    %38 = vector.load %arg10[%c0_29, %c65] : memref<3x640xf32, #tpu.memory_space<vmem>>, vector<3x512xf32>
    %c21 = arith.constant 21 : index
    %c0_30 = arith.constant 0 : index
    %39 = vector.load %arg11[%c21, %c0_30] : memref<32x512xf32, #tpu.memory_space<vmem>>, vector<3x512xf32>
    tpu.vector_store %arg11[%c21, %c0_30], %38 {strides = array<i32>} : memref<32x512xf32, #tpu.memory_space<vmem>>, vector<3x512xf32>,
    %c0_31 = arith.constant 0 : index
    %c66 = arith.constant 66 : index
    %40 = vector.load %arg10[%c0_31, %c66] : memref<3x640xf32, #tpu.memory_space<vmem>>, vector<3x512xf32>
    %41 = vector.broadcast %11 : vector<1x512xf32> to vector<3x512xf32>
    %42 = arith.mulf %40, %41 : vector<3x512xf32>
    %c24 = arith.constant 24 : index
    %c0_32 = arith.constant 0 : index
    %43 = vector.load %arg11[%c24, %c0_32] : memref<32x512xf32, #tpu.memory_space<vmem>>, vector<3x512xf32>
    tpu.vector_store %arg11[%c24, %c0_32], %42 {strides = array<i32>} : memref<32x512xf32, #tpu.memory_space<vmem>>, vector<3x512xf32>,
    %c0_33 = arith.constant 0 : index
    %c0_34 = arith.constant 0 : index
    %44 = vector.load %arg4[%c0_33, %c0_34] : memref<8x32xf32, #tpu.memory_space<vmem>>, vector<8x32xf32>
    %c0_35 = arith.constant 0 : index
    %c0_36 = arith.constant 0 : index
    %45 = vector.load %arg11[%c0_35, %c0_36] : memref<32x512xf32, #tpu.memory_space<vmem>>, vector<32x512xf32>
    %cst_37 = arith.constant dense<0.000000e+00> : vector<8x512xf32>
    %46 = tpu.matmul %44, %45, %cst_37 {dimension_numbers = #tpu.dot_dimension_numbers<[1], [0], [0], [1], [0, 0, 1, 1], [], []>} : vector<8x32xf32>, vector<32x512xf32>, vector<8x512xf32> -> vector<8x512xf32>
    %c0_38 = arith.constant 0 : index
    %c0_39 = arith.constant 0 : index
    %47 = vector.load %arg5[%c0_38, %c0_39] : memref<8x1xf32, #tpu.memory_space<vmem>>, vector<8x1xf32>
    %48 = vector.broadcast %47 : vector<8x1xf32> to vector<8x512xf32>
    %49 = arith.addf %46, %48 : vector<8x512xf32>
    %cst_40 = arith.constant 1.000000e+00 : f32
    %50 = vector.broadcast %cst_40 : f32 to vector<8x512xf32>
    %51 = arith.subf %49, %50 : vector<8x512xf32>
    %cst_41 = arith.constant 0.000000e+00 : f32
    %52 = vector.broadcast %cst_41 : f32 to vector<8x512xf32>
    %53 = arith.maximumf %51, %52 : vector<8x512xf32>
    %c0_42 = arith.constant 0 : index
    %c0_43 = arith.constant 0 : index
    %54 = vector.load %arg7[%c0_42, %c0_43] : memref<8x1xf32, #tpu.memory_space<vmem>>, vector<8x1xf32>
    %55 = vector.broadcast %54 : vector<8x1xf32> to vector<8x512xf32>
    %56 = arith.mulf %53, %55 : vector<8x512xf32>
    %c0_44 = arith.constant 0 : index
    %c0_45 = arith.constant 0 : index
    %57 = vector.load %arg8[%c0_44, %c0_45] : memref<8x1xf32, #tpu.memory_space<vmem>>, vector<8x1xf32>
    %58 = vector.broadcast %57 : vector<8x1xf32> to vector<8x512xf32>
    %59 = arith.addf %56, %58 : vector<8x512xf32>
    %cst_46 = arith.constant 0.000000e+00 : f32
    %60 = vector.broadcast %cst_46 : f32 to vector<8x512xf32>
    %61 = arith.maximumf %59, %60 : vector<8x512xf32>
    %c0_47 = arith.constant 0 : index
    %c0_48 = arith.constant 0 : index
    %c0_49 = arith.constant 0 : index
    %62 = vector.load %arg9[%c0_47, %c0_48, %c0_49] : memref<1x8x512xf32, #tpu.memory_space<vmem>>, vector<1x8x512xf32>
    %63 = vector.shape_cast %62 : vector<1x8x512xf32> to vector<8x512xf32>
    %64 = vector.shape_cast %61 : vector<8x512xf32> to vector<1x8x512xf32>
    tpu.vector_store %arg9[%c0_47, %c0_48, %c0_49], %64 {strides = array<i32>} : memref<1x8x512xf32, #tpu.memory_space<vmem>>, vector<1x8x512xf32>,
    return
  }
  func.func @transform_0(%arg0: i32, %arg1: i32) -> (i32, i32, i32) {
    %c0_i32 = arith.constant 0 : i32
    %c0_i32_0 = arith.constant 0 : i32
    return %arg0, %c0_i32, %arg1 : i32, i32, i32
  }
  func.func @transform_1(%arg0: i32, %arg1: i32) -> (i32, i32, i32) {
    %c1_i32 = arith.constant 1 : i32
    %0 = arith.addi %arg1, %c1_i32 : i32
    %c4_i32 = arith.constant 4 : i32
    %1 = arith.muli %0, %c4_i32 : i32
    %c0_i32 = arith.constant 0 : i32
    %c0_i32_0 = arith.constant 0 : i32
    return %arg0, %c0_i32, %1 : i32, i32, i32
  }
  func.func @transform_2(%arg0: i32, %arg1: i32) -> (i32, i32) {
    %c0_i32 = arith.constant 0 : i32
    %c0_i32_0 = arith.constant 0 : i32
    %c0_i32_1 = arith.constant 0 : i32
    return %c0_i32, %c0_i32_0 : i32, i32
  }
  func.func @transform_3(%arg0: i32, %arg1: i32) -> (i32, i32) {
    %c0_i32 = arith.constant 0 : i32
    %c0_i32_0 = arith.constant 0 : i32
    %c0_i32_1 = arith.constant 0 : i32
    return %c0_i32, %c0_i32_0 : i32, i32
  }
  func.func @transform_4(%arg0: i32, %arg1: i32) -> (i32, i32) {
    %c0_i32 = arith.constant 0 : i32
    %c0_i32_0 = arith.constant 0 : i32
    return %c0_i32, %arg1 : i32, i32
  }
  func.func @transform_5(%arg0: i32, %arg1: i32) -> (i32, i32) {
    %c0_i32 = arith.constant 0 : i32
    %c0_i32_0 = arith.constant 0 : i32
    %c0_i32_1 = arith.constant 0 : i32
    return %c0_i32, %c0_i32_0 : i32, i32
  }
  func.func @transform_6(%arg0: i32, %arg1: i32) -> (i32, i32) {
    %c0_i32 = arith.constant 0 : i32
    %c0_i32_0 = arith.constant 0 : i32
    %c0_i32_1 = arith.constant 0 : i32
    return %c0_i32, %c0_i32_0 : i32, i32
  }
  func.func @transform_7(%arg0: i32, %arg1: i32) -> (i32, i32, i32) {
    %c0_i32 = arith.constant 0 : i32
    %c0_i32_0 = arith.constant 0 : i32
    return %arg0, %c0_i32, %arg1 : i32, i32, i32
  }
}

</mosaic_0001>

<llo_original>
// kernel: model_forward.2
$region0: #{model_forward.2}
  #allocation0 [shape = 'u32[]', space=smem, size = 0x4, offset = 0x4, fixed_abs, tag = 'smem constant byte address 0x4 - core index']
  #allocation1 [shape = 'u32[144,128]{1,0:T(1,128)}', space=vmem, size = 0x12000, scoped, tag = 'internal scratch']
  #allocation2 [shape = 'f32[3,640]{1,0:T(4,128)}', space=vmem, size = 0x2800, scoped, tag = 'scratch operand']
  #allocation3 [shape = 'f32[32,512]{1,0:T(8,128)}', space=vmem, size = 0x10000, scoped, tag = 'scratch operand']
  %s0 = inlined_call_operand.vmem [shape: bf16[1,3,1152], index: 0, kind: input, shape index: {}, may-alias: {0,1}]
  %s1 = inlined_call_operand.vmem [shape: bf16[1,3,1152], index: 1, kind: input, shape index: {}, may-alias: {0,1}]
  %s2 = inlined_call_operand.vmem [shape: f32[8,32], index: 2, kind: input, shape index: {}]
  %s3 = inlined_call_operand.vmem [shape: f32[8,1], index: 3, kind: input, shape index: {}]
  %s4 = inlined_call_operand.vmem [shape: bf16[3,1024], index: 4, kind: input, shape index: {}]
  %s5 = inlined_call_operand.vmem [shape: f32[1,2,8,2], index: 5, kind: output, shape index: {}]
  %s6 = sld [smem:[#allocation0]]
  $region53: #{model_forward.2} parent=0
    _
  %s8 = ssub.s32 1, %s6
  %s9 = scalar_select 0, %s8, %s6
  loop: start=0, step=1, limit=4
  $region2: #{model_forward.2} parent=0 // loop_pre_header
    _
  $region3: #{model_forward.2} parent=0 // loop_header
    %s11 = sphi 0, %s15
    %p12 = scmp.ge.s32.totalorder %s11, 4
    %s18 = sphi 0, %s30
    %s19 = sphi 0, %s26
    %s20 = sphi 0, %s18
    %s21 = sphi 0, %s19
    %s22 = sphi 0, %s20
    %s23 = sphi 0, %s21
    %s35 = sphi 0, %s37
    %s38 = sphi 0, %s35
    %s39 = sphi 0, %s38
    %s55 = sphi 0, %s39
    %s67 = sphi 0, %s69
    %s70 = sphi 0, %s67
    %s71 = sphi 0, %s70
    %s87 = sphi 0, %s71
    %s91 = sphi 0, %s91
    %s93 = sphi 0, %s91
    %s94 = sphi 0, %s93
    %s108 = sphi 0, %s94
    %s112 = sphi 0, %s112
    %s114 = sphi 0, %s112
    %s115 = sphi 0, %s114
    %s129 = sphi 0, %s115
    %s135 = sphi 0, %s137
    %s138 = sphi 0, %s135
    %s139 = sphi 0, %s138
    %s155 = sphi 0, %s139
    %s163 = sphi 0, %s165
    %s166 = sphi 0, %s163
    %s167 = sphi 0, %s166
    %s183 = sphi 0, %s167
  $region4: #{model_forward.2} parent=0 // loop_header_branch
    %14 = sbr.rel (%p12) target = $region8
  $region5: #{model_forward.2} parent=0 // loop_body
    %s16 = ssub.s32 %s11, 1
    %s17 = ssub.s32 %s11, 2
    %s24 = sadd.s32 1, %s19
    %p25 = scmp.ge.s32.totalorder %s24, 2
    %s26 = scalar_select %p25, 0, %s24
    %s27 = sadd.s32 1, %s18
    %s28 = scalar_select %p25, %s27, %s18
    %p29 = scmp.ge.s32.totalorder %s28, 1
    %s30 = scalar_select %p29, 0, %s28
    %s31 = ssub.s32 %s18, %s30
    %s32 = ssub.s32 %s19, %s26
    %s33 = sor.u32 %s31, %s32
    %p34 = scmp.eq.s32.totalorder %s33, 0
    %s36 = sadd.s32 %s35, 1
    %s37 = scalar_select %p34, %s35, %s36
    %p40 = pneg %p34
    %p41 = scmp.eq.s32.totalorder %s11, 1
    %p42 = por %p40, %p41
    %p43 = scmp.ne.s32.totalorder %s35, %s38
    %p44 = scmp.eq.s32.totalorder %s11, 0
    %p45 = por %p43, %p44
    %p46 = scmp.ne.s32.totalorder %s35, %s38
    %p47 = scmp.eq.s32.totalorder %s16, 1
    %p48 = por %p46, %p47
    %p49 = scmp.ne.s32.totalorder %s38, %s39
    %p50 = scmp.eq.s32.totalorder %s16, 0
    %p51 = por %p49, %p50
    %p52 = scmp.ne.s32.totalorder %s38, %s39
    %p53 = scmp.eq.s32.totalorder %s17, 1
    %p54 = por %p52, %p53
    %p56 = scmp.ne.s32.totalorder %s39, %s55
    %p57 = scmp.eq.s32.totalorder %s17, 0
    %p58 = por %p56, %p57
    %s59 = sadd.s32 %s19, 1
    %s60 = smul.u32 %s59, 4
    %s61 = sadd.s32 %s26, 1
    %s62 = smul.u32 %s61, 4
    %s63 = ssub.s32 %s18, %s30
    %s64 = ssub.s32 %s60, %s62
    %s65 = sor.u32 %s63, %s64
    %p66 = scmp.eq.s32.totalorder %s65, 0
    %s68 = sadd.s32 %s67, 1
    %s69 = scalar_select %p66, %s67, %s68
    %p72 = pneg %p66
    %p73 = scmp.eq.s32.totalorder %s11, 1
    %p74 = por %p72, %p73
    %p75 = scmp.ne.s32.totalorder %s67, %s70
    %p76 = scmp.eq.s32.totalorder %s11, 0
    %p77 = por %p75, %p76
    %p78 = scmp.ne.s32.totalorder %s67, %s70
    %p79 = scmp.eq.s32.totalorder %s16, 1
    %p80 = por %p78, %p79
    %p81 = scmp.ne.s32.totalorder %s70, %s71
    %p82 = scmp.eq.s32.totalorder %s16, 0
    %p83 = por %p81, %p82
    %p84 = scmp.ne.s32.totalorder %s70, %s71
    %p85 = scmp.eq.s32.totalorder %s17, 1
    %p86 = por %p84, %p85
    %p88 = scmp.ne.s32.totalorder %s71, %s87
    %p89 = scmp.eq.s32.totalorder %s17, 0
    %p90 = por %p88, %p89
    %s92 = sadd.s32 %s91, 1
    %p95 = scmp.eq.s32.totalorder %s11, 1
    %p96 = scmp.ne.s32.totalorder %s91, %s93
    %p97 = scmp.eq.s32.totalorder %s11, 0
    %p98 = por %p96, %p97
    %p99 = scmp.ne.s32.totalorder %s91, %s93
    %p100 = scmp.eq.s32.totalorder %s16, 1
    %p101 = por %p99, %p100
    %p102 = scmp.ne.s32.totalorder %s93, %s94
    %p103 = scmp.eq.s32.totalorder %s16, 0
    %p104 = por %p102, %p103
    %p105 = scmp.ne.s32.totalorder %s93, %s94
    %p106 = scmp.eq.s32.totalorder %s17, 1
    %p107 = por %p105, %p106
    %p109 = scmp.ne.s32.totalorder %s94, %s108
    %p110 = scmp.eq.s32.totalorder %s17, 0
    %p111 = por %p109, %p110
    %s113 = sadd.s32 %s112, 1
    %p116 = scmp.eq.s32.totalorder %s11, 1
    %p117 = scmp.ne.s32.totalorder %s112, %s114
    %p118 = scmp.eq.s32.totalorder %s11, 0
    %p119 = por %p117, %p118
    %p120 = scmp.ne.s32.totalorder %s112, %s114
    %p121 = scmp.eq.s32.totalorder %s16, 1
    %p122 = por %p120, %p121
    %p123 = scmp.ne.s32.totalorder %s114, %s115
    %p124 = scmp.eq.s32.totalorder %s16, 0
    %p125 = por %p123, %p124
    %p126 = scmp.ne.s32.totalorder %s114, %s115
    %p127 = scmp.eq.s32.totalorder %s17, 1
    %p128 = por %p126, %p127
    %p130 = scmp.ne.s32.totalorder %s115, %s129
    %p131 = scmp.eq.s32.totalorder %s17, 0
    %p132 = por %p130, %p131
    %s133 = ssub.s32 %s19, %s26
    %p134 = scmp.eq.s32.totalorder %s133, 0
    %s136 = sadd.s32 %s135, 1
    %s137 = scalar_select %p134, %s135, %s136
    %p140 = pneg %p134
    %p141 = scmp.eq.s32.totalorder %s11, 1
    %p142 = por %p140, %p141
    %p143 = scmp.ne.s32.totalorder %s135, %s138
    %p144 = scmp.eq.s32.totalorder %s11, 0
    %p145 = por %p143, %p144
    %p146 = scmp.ne.s32.totalorder %s135, %s138
    %p147 = scmp.eq.s32.totalorder %s16, 1
    %p148 = por %p146, %p147
    %p149 = scmp.ne.s32.totalorder %s138, %s139
    %p150 = scmp.eq.s32.totalorder %s16, 0
    %p151 = por %p149, %p150
    %p152 = scmp.ne.s32.totalorder %s138, %s139
    %p153 = scmp.eq.s32.totalorder %s17, 1
    %p154 = por %p152, %p153
    %p156 = scmp.ne.s32.totalorder %s139, %s155
    %p157 = scmp.eq.s32.totalorder %s17, 0
    %p158 = por %p156, %p157
    %s159 = ssub.s32 %s18, %s30
    %s160 = ssub.s32 %s19, %s26
    %s161 = sor.u32 %s159, %s160
    %p162 = scmp.eq.s32.totalorder %s161, 0
    %s164 = sadd.s32 %s163, 1
    %s165 = scalar_select %p162, %s163, %s164
    %p168 = pneg %p162
    %p169 = scmp.eq.s32.totalorder %s11, 1
    %p170 = por %p168, %p169
    %p171 = scmp.ne.s32.totalorder %s163, %s166
    %p172 = scmp.eq.s32.totalorder %s11, 0
    %p173 = por %p171, %p172
    %p174 = scmp.ne.s32.totalorder %s163, %s166
    %p175 = scmp.eq.s32.totalorder %s16, 1
    %p176 = por %p174, %p175
    %p177 = scmp.ne.s32.totalorder %s166, %s167
    %p178 = scmp.eq.s32.totalorder %s16, 0
    %p179 = por %p177, %p178
    %p180 = scmp.ne.s32.totalorder %s166, %s167
    %p181 = scmp.eq.s32.totalorder %s17, 1
    %p182 = por %p180, %p181
    %p184 = scmp.ne.s32.totalorder %s167, %s183
    %p185 = scmp.eq.s32.totalorder %s17, 0
    %p186 = por %p184, %p185
    %p187 = scmp.le.s32.totalorder 1, %s11
    %p188 = scmp.lt.s32.totalorder %s11, 3
    %p189 = pnand %p187, %p188
    %p190 = pneg %p189
    // Predicated region
    $region9: #{model_forward.2} parent=5 // pred_check
      _
    $region10: #{model_forward.2} parent=5 // pred_check_branch
      %192 = sbr.rel (%p189) target = $region12
    $region11: #{model_forward.2} parent=5 // pred_region
      %s193 = ssub.s32 %s11, 1
      // Predicated region
      $region13: #{model_forward.2} parent=11 // pred_check
        %p194 = pneg %p104
      $region14: #{model_forward.2} parent=11 // pred_check_branch
        %196 = sbr.rel (%p194) target = $region16
      $region15: #{model_forward.2} parent=11 // pred_region
        _
      $region16: #{model_forward.2} parent=11 // pred_fallthru
        _
      // Predicated region
      $region17: #{model_forward.2} parent=11 // pred_check
        %p197 = pneg %p125
      $region18: #{model_forward.2} parent=11 // pred_check_branch
        %199 = sbr.rel (%p197) target = $region20
      $region19: #{model_forward.2} parent=11 // pred_region
        _
      $region20: #{model_forward.2} parent=11 // pred_fallthru
        _
    $region12: #{model_forward.2} parent=5 // pred_fallthru
      _
    %p200 = scmp.lt.s32.totalorder %s11, 2
    // Predicated region
    $region21: #{model_forward.2} parent=5 // pred_check
      %p201 = pneg %p200
    $region22: #{model_forward.2} parent=5 // pred_check_branch
      %203 = sbr.rel (%p201) target = $region24
    $region23: #{model_forward.2} parent=5 // pred_region
      // Predicated region
      $region25: #{model_forward.2} parent=23 // pred_check
        %p204 = pneg %p45
      $region26: #{model_forward.2} parent=23 // pred_check_branch
        %206 = sbr.rel (%p204) target = $region28
      $region27: #{model_forward.2} parent=23 // pred_region
        %s207 = smul.u32 4, %s19
        %s208 = ssub.s32 9, %s207
        %p209 = scmp.lt.s32.totalorder %s208, 4
        %s210 = scalar_select %p209, %s208, 4
        %s211 = smul.u32 32, %s210
        %p212 = scmp.lt.s32.totalorder %s18, 0
        %s213 = scalar_select %p212, %s18, 0
        %p214 = scmp.lt.s32.totalorder %s207, 8
        %s215 = scalar_select %p214, %s207, 8
        %s216 = smul.addr %s213, 9
        %s217 = sadd.s32 %s215, %s216
        %s218 = smul.addr %s217, 2
        %s219 = scalar_lea.vmem %s0, %s218
        %s220 = smul.u32 4, %s19
        %s221 = ssub.s32 9, %s220
        %p222 = scmp.lt.s32.totalorder %s221, 4
        %s223 = scalar_select %p222, %s221, 4
        %s224 = smul.u32 32, %s223
      $region28: #{model_forward.2} parent=23 // pred_fallthru
        _
      // Predicated region
      $region29: #{model_forward.2} parent=23 // pred_check
        %p225 = pneg %p77
      $region30: #{model_forward.2} parent=23 // pred_check_branch
        %227 = sbr.rel (%p225) target = $region32
      $region31: #{model_forward.2} parent=23 // pred_region
        %s228 = sadd.s32 %s19, 1
        %s229 = smul.u32 %s228, 4
        %p230 = scmp.lt.s32.totalorder %s18, 0
        %s231 = scalar_select %p230, %s18, 0
        %p232 = scmp.lt.s32.totalorder %s229, 8
        %s233 = scalar_select %p232, %s229, 8
        %s234 = smul.addr %s231, 9
        %s235 = sadd.s32 %s233, %s234
        %s236 = smul.addr %s235, 2
        %s237 = scalar_lea.vmem %s1, %s236
        %s238 = sadd.s32 %s19, 1
        %s239 = smul.u32 %s238, 4
      $region32: #{model_forward.2} parent=23 // pred_fallthru
        _
      // Predicated region
      $region33: #{model_forward.2} parent=23 // pred_check
        %p240 = pneg %p145
      $region34: #{model_forward.2} parent=23 // pred_check_branch
        %242 = sbr.rel (%p240) target = $region36
      $region35: #{model_forward.2} parent=23 // pred_region
        %s243 = smul.u32 4, %s19
        %p244 = scmp.lt.s32.totalorder %s243, 7
        %s245 = scalar_select %p244, %s243, 7
        %s246 = smul.addr %s245, 2
        %s247 = scalar_lea.vmem %s4, %s246
        %s248 = smul.u32 4, %s19
      $region36: #{model_forward.2} parent=23 // pred_fallthru
        _
    $region24: #{model_forward.2} parent=5 // pred_fallthru
      _
    %p249 = scmp.le.s32.totalorder 1, %s11
    %p250 = scmp.lt.s32.totalorder %s11, 3
    %p251 = pnand %p249, %p250
    %p252 = pneg %p251
    // Predicated region
    $region37: #{model_forward.2} parent=5 // pred_check
      _
    $region38: #{model_forward.2} parent=5 // pred_check_branch
      %254 = sbr.rel (%p251) target = $region40
    $region39: #{model_forward.2} parent=5 // pred_region
      %s255 = ssub.s32 %s11, 1
      %s256 = smul.u32 4, %s21
      %s257 = ssub.s32 9, %s256
      %p258 = scmp.lt.s32.totalorder %s257, 4
      %s259 = scalar_select %p258, %s257, 4
      %s260 = smul.u32 32, %s259
      %p261 = scmp.lt.s32.totalorder %s20, 0
      %s262 = scalar_select %p261, %s20, 0
      %p263 = scmp.lt.s32.totalorder %s256, 8
      %s264 = scalar_select %p263, %s256, 8
      %s265 = smul.addr %s262, 9
      %s266 = sadd.s32 %s264, %s265
      %s267 = smul.addr %s266, 2
      %s268 = scalar_lea.vmem %s0, %s267
      %p269 = pneg %p51
      %p270 = pneg %p48
      %s271 = sadd.s32 %s21, 1
      %s272 = smul.u32 %s271, 4
      %p273 = scmp.lt.s32.totalorder %s20, 0
      %s274 = scalar_select %p273, %s20, 0
      %p275 = scmp.lt.s32.totalorder %s272, 8
      %s276 = scalar_select %p275, %s272, 8
      %s277 = smul.addr %s274, 9
      %s278 = sadd.s32 %s276, %s277
      %s279 = smul.addr %s278, 2
      %s280 = scalar_lea.vmem %s1, %s279
      %p281 = pneg %p83
      %p282 = pneg %p80
      %p283 = pneg %p104
      %p284 = pneg %p101
      %p285 = pneg %p125
      %p286 = pneg %p122
      %s287 = smul.u32 4, %s21
      %p288 = scmp.lt.s32.totalorder %s287, 7
      %s289 = scalar_select %p288, %s287, 7
      %s290 = smul.addr %s289, 2
      %s291 = scalar_lea.vmem %s4, %s290
      %p292 = pneg %p151
      %p293 = pneg %p148
      %p294 = pneg %p179
      %p295 = pneg %p176
      %p296 = scmp.lt.s32.totalorder %s20, 0
      %s297 = scalar_select %p296, %s20, 0
      %p298 = scmp.lt.s32.totalorder %s21, 1
      %s299 = scalar_select %p298, %s21, 1
      %s300 = smul.addr %s297, 2
      %s301 = sadd.s32 %s299, %s300
      %s302 = smul.addr %s301, 8
      %s303 = scalar_lea.vmem %s5, %s302
      %s304 = smul.u32 4, %s21
      %s305 = ssub.s32 9, %s304
      %p306 = scmp.lt.s32.totalorder %s305, 4
      %s307 = scalar_select %p306, %s305, 4
      %s308 = smul.u32 32, %s307
      %p309 = scmp.lt.s32.totalorder %s20, 0
      %s310 = scalar_select %p309, %s20, 0
      %p311 = scmp.lt.s32.totalorder %s304, 8
      %s312 = scalar_select %p311, %s304, 8
      %s313 = smul.addr %s310, 9
      %s314 = sadd.s32 %s312, %s313
      %s315 = smul.addr %s314, 2
      %s316 = scalar_lea.vmem %s0, %s315
      %s317 = smul.u32 4, %s21
      %s318 = ssub.s32 9, %s317
      %p319 = scmp.lt.s32.totalorder %s318, 4
      %s320 = scalar_select %p319, %s318, 4
      %s321 = smul.u32 32, %s320
      %s322 = sadd.s32 %s21, 1
      %s323 = smul.u32 %s322, 4
      %p324 = scmp.lt.s32.totalorder %s20, 0
      %s325 = scalar_select %p324, %s20, 0
      %p326 = scmp.lt.s32.totalorder %s323, 8
      %s327 = scalar_select %p326, %s323, 8
      %s328 = smul.addr %s325, 9
      %s329 = sadd.s32 %s327, %s328
      %s330 = smul.addr %s329, 2
      %s331 = scalar_lea.vmem %s1, %s330
      %s332 = sadd.s32 %s21, 1
      %s333 = smul.u32 %s332, 4
      %s334 = smul.u32 4, %s21
      %p335 = scmp.lt.s32.totalorder %s334, 7
      %s336 = scalar_select %p335, %s334, 7
      %s337 = smul.addr %s336, 2
      %s338 = scalar_lea.vmem %s4, %s337
      %s339 = smul.u32 4, %s21
      %p340 = scmp.lt.s32.totalorder %s20, 0
      %s341 = scalar_select %p340, %s20, 0
      %p342 = scmp.lt.s32.totalorder %s21, 1
      %s343 = scalar_select %p342, %s21, 1
      %s344 = smul.addr %s341, 2
      %s345 = sadd.s32 %s343, %s344
      %s346 = smul.addr %s345, 8
      %s347 = scalar_lea.vmem %s5, %s346
      %v348 = vld [vmem:[%s316] sm:$0xff]
      %v349 = vunpack.c.l.bf16 %v348
      %v350 = vunpack.c.h.bf16 %v348
      %351 = vst [vmem:[#allocation2] sm:$0x77] %v349
      %352 = vst [vmem:[#allocation2 + $0x8] sm:$0x77] %v350
      %v353 = vld [vmem:[%s331] sm:$0x3]
      %v354 = vunpack.c.l.bf16 %v353
      %355 = vst [vmem:[#allocation2 + $0x10] sm:$0x7] %v354
      %v356 = vld [vmem:[%s338] sm:$0x55]
      %v357 = vunpack.c.l.bf16 %v356
      %v358 = vunpack.c.h.bf16 %v356
      %359 = vst [vmem:[#allocation3 + $0x60] sm:$0xf8] 0.0
      %360 = vst [vmem:[#allocation3 + $0x68] sm:$0xf8] 0.0
      %361 = vst [vmem:[#allocation3 + $0x70] sm:$0xf8] 0.0
      %362 = vst [vmem:[#allocation3 + $0x78] sm:$0xf8] 0.0
      %v363 = vld [vmem:[#allocation2] sm:$0x77]
      %v364 = vld [vmem:[#allocation2 + $0x8] sm:$0x77]
      %v367 = vlaneseq
      %v368 = vshrl.u32 %v367, 7
      %v369 = vsub.s32 0, %v368
      %v370 = vrot.slane %v357, %v369
      %v371 = vlaneseq
      %v372 = vshrl.u32 %v371, 7
      %v373 = vsub.s32 4, %v372
      %v374 = vrot.slane %v357, %v373
      %v375 = vlaneseq
      %v376 = vshrl.u32 %v375, 7
      %v377 = vsub.s32 0, %v376
      %v378 = vrot.slane %v358, %v377
      %v379 = vlaneseq
      %v380 = vshrl.u32 %v379, 7
      %v381 = vsub.s32 4, %v380
      %v382 = vrot.slane %v358, %v381
      %v387 = vlaneseq
      %v388 = vshrl.u32 %v387, 7
      %v389 = vsub.s32 0, %v388
      %v390 = vrot.slane %v370, %v389
      %v391 = vlaneseq
      %v392 = vshrl.u32 %v391, 7
      %v393 = vsub.s32 0, %v392
      %v394 = vrot.slane %v374, %v393
      %v395 = vlaneseq
      %v396 = vshrl.u32 %v395, 7
      %v397 = vsub.s32 0, %v396
      %v398 = vrot.slane %v378, %v397
      %v399 = vlaneseq
      %v400 = vshrl.u32 %v399, 7
      %v401 = vsub.s32 0, %v400
      %v402 = vrot.slane %v382, %v401
      %v407 = vcombine.low %v390, %v394
      %v408 = vcombine.low %v398, %v402
      %v411 = vmul.f32 %v363, %v407
      %v412 = vmul.f32 %v364, %v408
      %v415 = vcombine.high %v411, %v411
      %v416 = vcombine.high %v412, %v412
      %419 = vst [vmem:[#allocation3] sm:$0x7] %v411
      %420 = vst [vmem:[#allocation3 + $0x8] sm:$0x7] %v415
      %421 = vst [vmem:[#allocation3 + $0x10] sm:$0x7] %v412
      %422 = vst [vmem:[#allocation3 + $0x18] sm:$0x7] %v416
      %v423 = vld [vmem:[#allocation2] sm:$0x77]
      %v424 = vld [vmem:[#allocation2 + $0x8] sm:$0x77]
      %v425 = vld [vmem:[#allocation2 + $0x10] sm:$0x7]
      %v429 = vcombine.high %v423, %v423
      %v430 = vcombine.high %v424, %v424
      %v431 = vrot.slane %v423, 5
      %v432 = vrot.slane %v429, 5
      %v433 = vrot.slane %v424, 5
      %v434 = vrot.slane %v430, 5
      %v435 = vrot.slane %v425, 5
      %436 = vrot.lane.b32.xlu0 %v431, 127
      %v437 = vpop.permute.xlu0 %436
      %438 = vrot.lane.b32.xlu0 %v432, 127
      %v439 = vpop.permute.xlu0 %438
      %440 = vrot.lane.b32.xlu0 %v433, 127
      %v441 = vpop.permute.xlu0 %440
      %442 = vrot.lane.b32.xlu0 %v434, 127
      %v443 = vpop.permute.xlu0 %442
      %444 = vrot.lane.b32.xlu0 %v435, 127
      %v445 = vpop.permute.xlu0 %444
      %vm446 = vcmask 1039360
      %v447 = vsel %vm446, %v437, %v439
      %v448 = vsel %vm446, %v439, %v441
      %v449 = vsel %vm446, %v441, %v443
      %v450 = vsel %vm446, %v443, %v445
      %455 = vst [vmem:[#allocation3] sm:$0x38] %v447
      %456 = vst [vmem:[#allocation3 + $0x8] sm:$0x38] %v448
      %457 = vst [vmem:[#allocation3 + $0x10] sm:$0x38] %v449
      %458 = vst [vmem:[#allocation3 + $0x18] sm:$0x38] %v450
      %v459 = vld [vmem:[#allocation2] sm:$0x77]
      %v460 = vld [vmem:[#allocation2 + $0x8] sm:$0x77]
      %v461 = vld [vmem:[#allocation2 + $0x10] sm:$0x7]
      %v462 = vlaneseq
      %v463 = vshrl.u32 %v462, 7
      %v464 = vsub.s32 1, %v463
      %v465 = vrot.slane %v357, %v464
      %v466 = vlaneseq
      %v467 = vshrl.u32 %v466, 7
      %v468 = vsub.s32 5, %v467
      %v469 = vrot.slane %v357, %v468
      %v470 = vlaneseq
      %v471 = vshrl.u32 %v470, 7
      %v472 = vsub.s32 1, %v471
      %v473 = vrot.slane %v358, %v472
      %v474 = vlaneseq
      %v475 = vshrl.u32 %v474, 7
      %v476 = vsub.s32 5, %v475
      %v477 = vrot.slane %v358, %v476
      %v482 = vlaneseq
      %v483 = vshrl.u32 %v482, 7
      %v484 = vsub.s32 1, %v483
      %v485 = vrot.slane %v465, %v484
      %v486 = vlaneseq
      %v487 = vshrl.u32 %v486, 7
      %v488 = vsub.s32 1, %v487
      %v489 = vrot.slane %v469, %v488
      %v490 = vlaneseq
      %v491 = vshrl.u32 %v490, 7
      %v492 = vsub.s32 1, %v491
      %v493 = vrot.slane %v473, %v492
      %v494 = vlaneseq
      %v495 = vshrl.u32 %v494, 7
      %v496 = vsub.s32 1, %v495
      %v497 = vrot.slane %v477, %v496
      %v502 = vcombine.low %v485, %v489
      %v503 = vcombine.low %v493, %v497
      %504 = vrot.lane.b32.xlu0 %v502, 2
      %v505 = vpop.permute.xlu0 %504
      %506 = vrot.lane.b32.xlu0 %v503, 2
      %v507 = vpop.permute.xlu0 %506
      %v508 = vrot.slane %v505, 4
      %v509 = vrot.slane %v507, 4
      %vm510 = vcmask 15360
      %v511 = vsel %vm510, %v508, %v505
      %vm512 = vcmask 1043456
      %v513 = vsel %vm512, %v508, %v509
      %v514 = vsel %vm510, %v513, %v507
      %v518 = vmul.f32 %v459, %v511
      %v519 = vmul.f32 %v460, %v514
      %v520 = vmul.f32 %v461, %v509
      %v524 = vcombine.high %v518, %v518
      %v525 = vcombine.high %v519, %v519
      %v526 = vrot.slane %v518, 2
      %v527 = vrot.slane %v524, 2
      %v528 = vrot.slane %v519, 2
      %v529 = vrot.slane %v525, 2
      %v530 = vrot.slane %v520, 2
      %531 = vrot.lane.b32.xlu0 %v526, 126
      %v532 = vpop.permute.xlu0 %531
      %533 = vrot.lane.b32.xlu0 %v527, 126
      %v534 = vpop.permute.xlu0 %533
      %535 = vrot.lane.b32.xlu0 %v528, 126
      %v536 = vpop.permute.xlu0 %535
      %537 = vrot.lane.b32.xlu0 %v529, 126
      %v538 = vpop.permute.xlu0 %537
      %539 = vrot.lane.b32.xlu0 %v530, 126
      %v540 = vpop.permute.xlu0 %539
      %vm541 = vcmask 1031168
      %v542 = vsel %vm541, %v532, %v534
      %v543 = vsel %vm541, %v534, %v536
      %v544 = vsel %vm541, %v536, %v538
      %v545 = vsel %vm541, %v538, %v540
      %550 = vst [vmem:[#allocation3] sm:$0xc0] %v542
      %551 = vst [vmem:[#allocation3 + $0x8] sm:$0xc0] %v543
      %552 = vst [vmem:[#allocation3 + $0x10] sm:$0xc0] %v544
      %553 = vst [vmem:[#allocation3 + $0x18] sm:$0xc0] %v545
      %554 = vst [vmem:[#allocation3 + $0x20] sm:$0x1] %v542
      %555 = vst [vmem:[#allocation3 + $0x28] sm:$0x1] %v543
      %556 = vst [vmem:[#allocation3 + $0x30] sm:$0x1] %v544
      %557 = vst [vmem:[#allocation3 + $0x38] sm:$0x1] %v545
      %v558 = vld [vmem:[#allocation2] sm:$0x77]
      %v559 = vld [vmem:[#allocation2 + $0x8] sm:$0x77]
      %v560 = vld [vmem:[#allocation2 + $0x10] sm:$0x7]
      %561 = vrot.lane.b32.xlu0 %v407, 32
      %v562 = vpop.permute.xlu0 %561
      %563 = vrot.lane.b32.xlu0 %v408, 32
      %v564 = vpop.permute.xlu0 %563
      %v565 = vrot.slane %v562, 4
      %v566 = vrot.slane %v564, 4
      %vm567 = vcmask 261120
      %v568 = vsel %vm567, %v565, %v562
      %v569 = vsel %vm512, %v565, %v566
      %v570 = vsel %vm567, %v569, %v564
      %v574 = vmul.f32 %v558, %v568
      %v575 = vmul.f32 %v559, %v570
      %v576 = vmul.f32 %v560, %v566
      %v580 = vcombine.high %v574, %v574
      %v581 = vcombine.high %v575, %v575
      %v582 = vrot.slane %v574, 7
      %v583 = vrot.slane %v580, 7
      %v584 = vrot.slane %v575, 7
      %v585 = vrot.slane %v581, 7
      %v586 = vrot.slane %v576, 7
      %587 = vrot.lane.b32.xlu0 %v582, 96
      %v588 = vpop.permute.xlu0 %587
      %589 = vrot.lane.b32.xlu0 %v583, 96
      %v590 = vpop.permute.xlu0 %589
      %591 = vrot.lane.b32.xlu0 %v584, 96
      %v592 = vpop.permute.xlu0 %591
      %593 = vrot.lane.b32.xlu0 %v585, 96
      %v594 = vpop.permute.xlu0 %593
      %595 = vrot.lane.b32.xlu0 %v586, 96
      %v596 = vpop.permute.xlu0 %595
      %vm597 = vcmask 785408
      %v598 = vsel %vm597, %v588, %v590
      %v599 = vsel %vm597, %v590, %v592
      %v600 = vsel %vm597, %v592, %v594
      %v601 = vsel %vm597, %v594, %v596
      %606 = vst [vmem:[#allocation3 + $0x20] sm:$0xe] %v598
      %607 = vst [vmem:[#allocation3 + $0x28] sm:$0xe] %v599
      %608 = vst [vmem:[#allocation3 + $0x30] sm:$0xe] %v600
      %609 = vst [vmem:[#allocation3 + $0x38] sm:$0xe] %v601
      %v610 = vld [vmem:[#allocation2] sm:$0x77]
      %v611 = vld [vmem:[#allocation2 + $0x8] sm:$0x77]
      %v612 = vld [vmem:[#allocation2 + $0x10] sm:$0x7]
      %v616 = vcombine.low %v610, %v610
      %v617 = vcombine.low %v611, %v611
      %v618 = vcombine.low %v612, %v612
      %619 = vrot.lane.b32.xlu0 %v616, 95
      %v620 = vpop.permute.xlu0 %619
      %621 = vrot.lane.b32.xlu0 %v610, 95
      %v622 = vpop.permute.xlu0 %621
      %623 = vrot.lane.b32.xlu0 %v617, 95
      %v624 = vpop.permute.xlu0 %623
      %625 = vrot.lane.b32.xlu0 %v611, 95
      %v626 = vpop.permute.xlu0 %625
      %627 = vrot.lane.b32.xlu0 %v618, 95
      %v628 = vpop.permute.xlu0 %627
      %vm629 = vcmask 777216
      %v630 = vsel %vm629, %v620, %v622
      %v631 = vsel %vm629, %v622, %v624
      %v632 = vsel %vm629, %v624, %v626
      %v633 = vsel %vm629, %v626, %v628
      %638 = vst [vmem:[#allocation3 + $0x20] sm:$0x70] %v630
      %639 = vst [vmem:[#allocation3 + $0x28] sm:$0x70] %v631
      %640 = vst [vmem:[#allocation3 + $0x30] sm:$0x70] %v632
      %641 = vst [vmem:[#allocation3 + $0x38] sm:$0x70] %v633
      %v642 = vld [vmem:[#allocation2] sm:$0x77]
      %v643 = vld [vmem:[#allocation2 + $0x8] sm:$0x77]
      %v644 = vld [vmem:[#allocation2 + $0x10] sm:$0x7]
      %645 = vrot.lane.b32.xlu0 %v502, 34
      %v646 = vpop.permute.xlu0 %645
      %647 = vrot.lane.b32.xlu0 %v503, 34
      %v648 = vpop.permute.xlu0 %647
      %v649 = vrot.slane %v646, 4
      %v650 = vrot.slane %v648, 4
      %vm651 = vcmask 277504
      %v652 = vsel %vm651, %v649, %v646
      %v653 = vsel %vm512, %v649, %v650
      %v654 = vsel %vm651, %v653, %v648
      %v658 = vmul.f32 %v642, %v652
      %v659 = vmul.f32 %v643, %v654
      %v660 = vmul.f32 %v644, %v650
      %v664 = vcombine.high %v658, %v658
      %v665 = vcombine.high %v659, %v659
      %v666 = vrot.slane %v658, 1
      %v667 = vrot.slane %v664, 1
      %v668 = vrot.slane %v659, 1
      %v669 = vrot.slane %v665, 1
      %v670 = vrot.slane %v660, 1
      %671 = vrot.lane.b32.xlu0 %v666, 94
      %v672 = vpop.permute.xlu0 %671
      %673 = vrot.lane.b32.xlu0 %v667, 94
      %v674 = vpop.permute.xlu0 %673
      %675 = vrot.lane.b32.xlu0 %v668, 94
      %v676 = vpop.permute.xlu0 %675
      %677 = vrot.lane.b32.xlu0 %v669, 94
      %v678 = vpop.permute.xlu0 %677
      %679 = vrot.lane.b32.xlu0 %v670, 94
      %v680 = vpop.permute.xlu0 %679
      %vm681 = vcmask 769024
      %v682 = vsel %vm681, %v672, %v674
      %v683 = vsel %vm681, %v674, %v676
      %v684 = vsel %vm681, %v676, %v678
      %v685 = vsel %vm681, %v678, %v680
      %690 = vst [vmem:[#allocation3 + $0x20] sm:$0x80] %v682
      %691 = vst [vmem:[#allocation3 + $0x28] sm:$0x80] %v683
      %692 = vst [vmem:[#allocation3 + $0x30] sm:$0x80] %v684
      %693 = vst [vmem:[#allocation3 + $0x38] sm:$0x80] %v685
      %694 = vst [vmem:[#allocation3 + $0x40] sm:$0x3] %v682
      %695 = vst [vmem:[#allocation3 + $0x48] sm:$0x3] %v683
      %696 = vst [vmem:[#allocation3 + $0x50] sm:$0x3] %v684
      %697 = vst [vmem:[#allocation3 + $0x58] sm:$0x3] %v685
      %v698 = vld [vmem:[#allocation2] sm:$0x77]
      %v699 = vld [vmem:[#allocation2 + $0x8] sm:$0x77]
      %v700 = vld [vmem:[#allocation2 + $0x10] sm:$0x7]
      %701 = vrot.lane.b32.xlu0 %v407, 64
      %v702 = vpop.permute.xlu0 %701
      %703 = vrot.lane.b32.xlu0 %v408, 64
      %v704 = vpop.permute.xlu0 %703
      %v705 = vrot.slane %v702, 4
      %v706 = vrot.slane %v704, 4
      %vm707 = vcmask 523264
      %v708 = vsel %vm707, %v705, %v702
      %v709 = vsel %vm512, %v705, %v706
      %v710 = vsel %vm707, %v709, %v704
      %v714 = vmul.f32 %v698, %v708
      %v715 = vmul.f32 %v699, %v710
      %v716 = vmul.f32 %v700, %v706
      %v720 = vcombine.high %v714, %v714
      %v721 = vcombine.high %v715, %v715
      %v722 = vrot.slane %v714, 6
      %v723 = vrot.slane %v720, 6
      %v724 = vrot.slane %v715, 6
      %v725 = vrot.slane %v721, 6
      %v726 = vrot.slane %v716, 6
      %727 = vrot.lane.b32.xlu0 %v722, 64
      %v728 = vpop.permute.xlu0 %727
      %729 = vrot.lane.b32.xlu0 %v723, 64
      %v730 = vpop.permute.xlu0 %729
      %731 = vrot.lane.b32.xlu0 %v724, 64
      %v732 = vpop.permute.xlu0 %731
      %733 = vrot.lane.b32.xlu0 %v725, 64
      %v734 = vpop.permute.xlu0 %733
      %735 = vrot.lane.b32.xlu0 %v726, 64
      %v736 = vpop.permute.xlu0 %735
      %v737 = vsel %vm707, %v728, %v730
      %v738 = vsel %vm707, %v730, %v732
      %v739 = vsel %vm707, %v732, %v734
      %v740 = vsel %vm707, %v734, %v736
      %745 = vst [vmem:[#allocation3 + $0x40] sm:$0x1c] %v737
      %746 = vst [vmem:[#allocation3 + $0x48] sm:$0x1c] %v738
      %747 = vst [vmem:[#allocation3 + $0x50] sm:$0x1c] %v739
      %748 = vst [vmem:[#allocation3 + $0x58] sm:$0x1c] %v740
      %v749 = vld [vmem:[#allocation2] sm:$0x77]
      %v750 = vld [vmem:[#allocation2 + $0x8] sm:$0x77]
      %v751 = vld [vmem:[#allocation2 + $0x10] sm:$0x7]
      %v755 = vcombine.high %v749, %v749
      %v756 = vcombine.high %v750, %v750
      %v757 = vrot.slane %v749, 3
      %v758 = vrot.slane %v755, 3
      %v759 = vrot.slane %v750, 3
      %v760 = vrot.slane %v756, 3
      %v761 = vrot.slane %v751, 3
      %762 = vrot.lane.b32.xlu0 %v757, 63
      %v763 = vpop.permute.xlu0 %762
      %764 = vrot.lane.b32.xlu0 %v758, 63
      %v765 = vpop.permute.xlu0 %764
      %766 = vrot.lane.b32.xlu0 %v759, 63
      %v767 = vpop.permute.xlu0 %766
      %768 = vrot.lane.b32.xlu0 %v760, 63
      %v769 = vpop.permute.xlu0 %768
      %770 = vrot.lane.b32.xlu0 %v761, 63
      %v771 = vpop.permute.xlu0 %770
      %vm772 = vcmask 515072
      %v773 = vsel %vm772, %v763, %v765
      %v774 = vsel %vm772, %v765, %v767
      %v775 = vsel %vm772, %v767, %v769
      %v776 = vsel %vm772, %v769, %v771
      %781 = vst [vmem:[#allocation3 + $0x40] sm:$0xe0] %v773
      %782 = vst [vmem:[#allocation3 + $0x48] sm:$0xe0] %v774
      %783 = vst [vmem:[#allocation3 + $0x50] sm:$0xe0] %v775
      %784 = vst [vmem:[#allocation3 + $0x58] sm:$0xe0] %v776
      %v785 = vld [vmem:[#allocation2] sm:$0x77]
      %v786 = vld [vmem:[#allocation2 + $0x8] sm:$0x77]
      %v787 = vld [vmem:[#allocation2 + $0x10] sm:$0x7]
      %788 = vrot.lane.b32.xlu0 %v502, 66
      %v789 = vpop.permute.xlu0 %788
      %790 = vrot.lane.b32.xlu0 %v503, 66
      %v791 = vpop.permute.xlu0 %790
      %v792 = vrot.slane %v789, 4
      %v793 = vrot.slane %v791, 4
      %vm794 = vcmask 539648
      %v795 = vsel %vm794, %v792, %v789
      %v796 = vsel %vm512, %v792, %v793
      %v797 = vsel %vm794, %v796, %v791
      %v801 = vmul.f32 %v785, %v795
      %v802 = vmul.f32 %v786, %v797
      %v803 = vmul.f32 %v787, %v793
      %v807 = vcombine.high %v801, %v801
      %v808 = vcombine.high %v802, %v802
      %809 = vrot.lane.b32.xlu0 %v801, 62
      %v810 = vpop.permute.xlu0 %809
      %811 = vrot.lane.b32.xlu0 %v807, 62
      %v812 = vpop.permute.xlu0 %811
      %813 = vrot.lane.b32.xlu0 %v802, 62
      %v814 = vpop.permute.xlu0 %813
      %815 = vrot.lane.b32.xlu0 %v808, 62
      %v816 = vpop.permute.xlu0 %815
      %817 = vrot.lane.b32.xlu0 %v803, 62
      %v818 = vpop.permute.xlu0 %817
      %vm819 = vcmask 506880
      %v820 = vsel %vm819, %v810, %v812
      %v821 = vsel %vm819, %v812, %v814
      %v822 = vsel %vm819, %v814, %v816
      %v823 = vsel %vm819, %v816, %v818
      %828 = vst [vmem:[#allocation3 + $0x60] sm:$0x7] %v820
      %829 = vst [vmem:[#allocation3 + $0x68] sm:$0x7] %v821
      %830 = vst [vmem:[#allocation3 + $0x70] sm:$0x7] %v822
      %831 = vst [vmem:[#allocation3 + $0x78] sm:$0x7] %v823
      %v832 = vld [vmem:[%s2] sm:$0xff]
      %v833 = vld [vmem:[#allocation3] sm:$0xff]
      %v834 = vld [vmem:[#allocation3 + $0x8] sm:$0xff]
      %v835 = vld [vmem:[#allocation3 + $0x10] sm:$0xff]
      %v836 = vld [vmem:[#allocation3 + $0x18] sm:$0xff]
      %v837 = vld [vmem:[#allocation3 + $0x20] sm:$0xff]
      %v838 = vld [vmem:[#allocation3 + $0x28] sm:$0xff]
      %v839 = vld [vmem:[#allocation3 + $0x30] sm:$0xff]
      %v840 = vld [vmem:[#allocation3 + $0x38] sm:$0xff]
      %v841 = vld [vmem:[#allocation3 + $0x40] sm:$0xff]
      %v842 = vld [vmem:[#allocation3 + $0x48] sm:$0xff]
      %v843 = vld [vmem:[#allocation3 + $0x50] sm:$0xff]
      %v844 = vld [vmem:[#allocation3 + $0x58] sm:$0xff]
      %v845 = vld [vmem:[#allocation3 + $0x60] sm:$0xff]
      %v846 = vld [vmem:[#allocation3 + $0x68] sm:$0xff]
      %v847 = vld [vmem:[#allocation3 + $0x70] sm:$0xff]
      %v848 = vld [vmem:[#allocation3 + $0x78] sm:$0xff]
      %v849 = vld [vmem:[%s3] sm:$0xff]
      %851 = vset.pattern.permute.xlu0 0
      %852 = vperm.xlu0 %851, %v849
      %v853 = vpop.permute.xlu0 %852
      %v856 = vsel %vm567, %v832, 0
      %858 = vmatprep.subr.mxu0 0.0
      %859 = vmatpush1.msra.mxu0 0.0
      %860 = vmatprep.subr.mxu0 0.0
      %861 = vmatpush1.msra.mxu0 0.0
      %862 = vmatprep.subr.mxu0 0.0
      %863 = vmatpush1.msra.mxu0 0.0
      %864 = vmatprep.subr.mxu0 0.0
      %865 = vmatpush1.msra.mxu0 0.0
      %866 = vmatprep.subr.mxu0 0.0
      %867 = vmatpush1.msra.mxu0 0.0
      %868 = vmatprep.subr.mxu0 0.0
      %869 = vmatpush1.msra.mxu0 0.0
      %870 = vmatprep.subr.mxu0 0.0
      %871 = vmatpush1.msra.mxu0 0.0
      %872 = vmatprep.subr.mxu0 0.0
      %873 = vmatpush1.msra.mxu0 0.0
      %874 = vmatprep.subr.mxu0 0.0
      %875 = vmatpush1.msra.mxu0 0.0
      %876 = vmatprep.subr.mxu0 0.0
      %877 = vmatpush1.msra.mxu0 0.0
      %878 = vmatprep.subr.mxu0 0.0
      %879 = vmatpush1.msra.mxu0 0.0
      %880 = vmatprep.subr.mxu0 0.0
      %881 = vmatpush1.msra.mxu0 0.0
      %882 = vmatprep.subr.mxu0 %v846
      %883 = vmatpush1.msra.mxu0 %v845
      %884 = vmatprep.subr.mxu0 %v842
      %885 = vmatpush1.msra.mxu0 %v841
      %886 = vmatprep.subr.mxu0 %v838
      %887 = vmatpush1.msra.mxu0 %v837
      %888 = vmatprep.subr.mxu0 %v834
      %889 = vmatpush1.msra.mxu0 %v833
      %890 = vmatprep.subr.mxu0 0.0
      %891 = vmatpush2.msra.mxu0 0.0
      %892 = vmatprep.subr.mxu0 0.0
      %893 = vmatpush2.msra.mxu0 0.0
      %894 = vmatprep.subr.mxu0 0.0
      %895 = vmatpush2.msra.mxu0 0.0
      %896 = vmatprep.subr.mxu0 0.0
      %897 = vmatpush2.msra.mxu0 0.0
      %898 = vmatprep.subr.mxu0 0.0
      %899 = vmatpush2.msra.mxu0 0.0
      %900 = vmatprep.subr.mxu0 0.0
      %901 = vmatpush2.msra.mxu0 0.0
      %902 = vmatprep.subr.mxu0 0.0
      %903 = vmatpush2.msra.mxu0 0.0
      %904 = vmatprep.subr.mxu0 0.0
      %905 = vmatpush2.msra.mxu0 0.0
      %906 = vmatprep.subr.mxu0 0.0
      %907 = vmatpush2.msra.mxu0 0.0
      %908 = vmatprep.subr.mxu0 0.0
      %909 = vmatpush2.msra.mxu0 0.0
      %910 = vmatprep.subr.mxu0 0.0
      %911 = vmatpush2.msra.mxu0 0.0
      %912 = vmatprep.subr.mxu0 0.0
      %913 = vmatpush2.msra.mxu0 0.0
      %914 = vmatprep.subr.mxu0 0.0
      %915 = vmatpush2.msra.mxu0 0.0
      %916 = vmatprep.subr.mxu0 0.0
      %917 = vmatpush2.msra.mxu0 0.0
      %918 = vmatprep.subr.mxu0 0.0
      %919 = vmatpush2.msra.mxu0 0.0
      %920 = vmatprep.subr.mxu0 0.0
      %921 = vmatpush2.msra.mxu0 0.0
      %922 = vmatprep.mubr.f32.mxu0 0.0
      %923 = vmatmul.mubr.f32.gmra.mxu0 %v856
      %v924 = vpop.f32.mrf.mxu0
      %v925 = vadd.f32 %v853, %v924
      %v926 = vpop.f32.mrf.mxu0
      %v927 = vadd.f32 %v853, %v926
      %928 = vdwg.mxu0
      %929 = vmatprep.subr.mxu0 0.0
      %930 = vmatpush1.msra.mxu0 0.0
      %931 = vmatprep.subr.mxu0 0.0
      %932 = vmatpush1.msra.mxu0 0.0
      %933 = vmatprep.subr.mxu0 0.0
      %934 = vmatpush1.msra.mxu0 0.0
      %935 = vmatprep.subr.mxu0 0.0
      %936 = vmatpush1.msra.mxu0 0.0
      %937 = vmatprep.subr.mxu0 0.0
      %938 = vmatpush1.msra.mxu0 0.0
      %939 = vmatprep.subr.mxu0 0.0
      %940 = vmatpush1.msra.mxu0 0.0
      %941 = vmatprep.subr.mxu0 0.0
      %942 = vmatpush1.msra.mxu0 0.0
      %943 = vmatprep.subr.mxu0 0.0
      %944 = vmatpush1.msra.mxu0 0.0
      %945 = vmatprep.subr.mxu0 0.0
      %946 = vmatpush1.msra.mxu0 0.0
      %947 = vmatprep.subr.mxu0 0.0
      %948 = vmatpush1.msra.mxu0 0.0
      %949 = vmatprep.subr.mxu0 0.0
      %950 = vmatpush1.msra.mxu0 0.0
      %951 = vmatprep.subr.mxu0 0.0
      %952 = vmatpush1.msra.mxu0 0.0
      %953 = vmatprep.subr.mxu0 %v848
      %954 = vmatpush1.msra.mxu0 %v847
      %955 = vmatprep.subr.mxu0 %v844
      %956 = vmatpush1.msra.mxu0 %v843
      %957 = vmatprep.subr.mxu0 %v840
      %958 = vmatpush1.msra.mxu0 %v839
      %959 = vmatprep.subr.mxu0 %v836
      %960 = vmatpush1.msra.mxu0 %v835
      %961 = vmatprep.subr.mxu0 0.0
      %962 = vmatpush2.msra.mxu0 0.0
      %963 = vmatprep.subr.mxu0 0.0
      %964 = vmatpush2.msra.mxu0 0.0
      %965 = vmatprep.subr.mxu0 0.0
      %966 = vmatpush2.msra.mxu0 0.0
      %967 = vmatprep.subr.mxu0 0.0
      %968 = vmatpush2.msra.mxu0 0.0
      %969 = vmatprep.subr.mxu0 0.0
      %970 = vmatpush2.msra.mxu0 0.0
      %971 = vmatprep.subr.mxu0 0.0
      %972 = vmatpush2.msra.mxu0 0.0
      %973 = vmatprep.subr.mxu0 0.0
      %974 = vmatpush2.msra.mxu0 0.0
      %975 = vmatprep.subr.mxu0 0.0
      %976 = vmatpush2.msra.mxu0 0.0
      %977 = vmatprep.subr.mxu0 0.0
      %978 = vmatpush2.msra.mxu0 0.0
      %979 = vmatprep.subr.mxu0 0.0
      %980 = vmatpush2.msra.mxu0 0.0
      %981 = vmatprep.subr.mxu0 0.0
      %982 = vmatpush2.msra.mxu0 0.0
      %983 = vmatprep.subr.mxu0 0.0
      %984 = vmatpush2.msra.mxu0 0.0
      %985 = vmatprep.subr.mxu0 0.0
      %986 = vmatpush2.msra.mxu0 0.0
      %987 = vmatprep.subr.mxu0 0.0
      %988 = vmatpush2.msra.mxu0 0.0
      %989 = vmatprep.subr.mxu0 0.0
      %990 = vmatpush2.msra.mxu0 0.0
      %991 = vmatprep.subr.mxu0 0.0
      %992 = vmatpush2.msra.mxu0 0.0
      %993 = vmatprep.mubr.f32.mxu0 0.0
      %994 = vmatmul.mubr.f32.gmra.mxu0 %v856
      %v995 = vpop.f32.mrf.mxu0
      %v996 = vadd.f32 %v853, %v995
      %v997 = vpop.f32.mrf.mxu0
      %v998 = vadd.f32 %v853, %v997
      %999 = vdwg.mxu0
      %v1000 = vsub.f32 %v925, 1.0
      %v1001 = vsub.f32 %v927, 1.0
      %v1002 = vsub.f32 %v996, 1.0
      %v1003 = vsub.f32 %v998, 1.0
      %v1004 = vmax.f32 %v1000, 0.0
      %v1005 = vmax.f32 %v1001, 0.0
      %v1006 = vmax.f32 %v1002, 0.0
      %v1007 = vmax.f32 %v1003, 0.0
      %v1008 = vld [vmem:[%s338] sm:$0xaa]
      %v1009 = vunpack.c.l.bf16 %v1008
      %v1010 = vunpack.c.h.bf16 %v1008
      %v1013 = vlaneseq
      %v1014 = vshrl.u32 %v1013, 7
      %v1015 = vsub.s32 2, %v1014
      %v1016 = vrot.slane %v1009, %v1015
      %v1017 = vlaneseq
      %v1018 = vshrl.u32 %v1017, 7
      %v1019 = vsub.s32 6, %v1018
      %v1020 = vrot.slane %v1009, %v1019
      %v1021 = vlaneseq
      %v1022 = vshrl.u32 %v1021, 7
      %v1023 = vsub.s32 2, %v1022
      %v1024 = vrot.slane %v1010, %v1023
      %v1025 = vlaneseq
      %v1026 = vshrl.u32 %v1025, 7
      %v1027 = vsub.s32 6, %v1026
      %v1028 = vrot.slane %v1010, %v1027
      %v1033 = vlaneseq
      %v1034 = vshrl.u32 %v1033, 7
      %v1035 = vsub.s32 2, %v1034
      %v1036 = vrot.slane %v1016, %v1035
      %v1037 = vlaneseq
      %v1038 = vshrl.u32 %v1037, 7
      %v1039 = vsub.s32 2, %v1038
      %v1040 = vrot.slane %v1020, %v1039
      %v1041 = vlaneseq
      %v1042 = vshrl.u32 %v1041, 7
      %v1043 = vsub.s32 2, %v1042
      %v1044 = vrot.slane %v1024, %v1043
      %v1045 = vlaneseq
      %v1046 = vshrl.u32 %v1045, 7
      %v1047 = vsub.s32 2, %v1046
      %v1048 = vrot.slane %v1028, %v1047
      %v1049 = vmul.f32 %v1004, %v1036
      %v1050 = vmul.f32 %v1005, %v1040
      %v1051 = vmul.f32 %v1006, %v1044
      %v1052 = vmul.f32 %v1007, %v1048
      %v1053 = vadd.f32 %v1049, %v1050
      %v1054 = vadd.f32 %v1053, %v1051
      %v1055 = vadd.f32 %v1054, %v1052
      %1056 = vadd.xlane.f32.xlu0 %v1055
      %v1057 = vpop.xlane.xlu0 %1056
      %vm1058 = vcmask 7168
      %1059 = vst.msk [vmem:[%s347] sm:$0xff] %vm1058, %v1057
      %v1060 = vmul.f32 %v1049, %v1004
      %v1061 = vmul.f32 %v1050, %v1005
      %v1062 = vmul.f32 %v1051, %v1006
      %v1063 = vmul.f32 %v1052, %v1007
      %v1064 = vadd.f32 %v1060, %v1061
      %v1065 = vadd.f32 %v1064, %v1062
      %v1066 = vadd.f32 %v1065, %v1063
      %1067 = vadd.xlane.f32.xlu0 %v1066
      %v1068 = vpop.xlane.xlu0 %1067
      %vm1069 = vcmask 15368
      %1070 = vst.msk [vmem:[%s347] sm:$0xff] %vm1069, %v1068
      %p1071 = scmp.lt.s32.totalorder %s20, 0
      %s1072 = scalar_select %p1071, %s20, 0
      %p1073 = scmp.lt.s32.totalorder %s21, 1
      %s1074 = scalar_select %p1073, %s21, 1
      %s1075 = smul.addr %s1072, 2
      %s1076 = sadd.s32 %s1074, %s1075
      %s1077 = smul.addr %s1076, 8
      %s1078 = scalar_lea.vmem %s5, %s1077
      // Predicated region
      $region41: #{model_forward.2} parent=39 // pred_check
        %p1079 = pneg %p176
      $region42: #{model_forward.2} parent=39 // pred_check_branch
        %1081 = sbr.rel (%p1079) target = $region44
      $region43: #{model_forward.2} parent=39 // pred_region
        _
      $region44: #{model_forward.2} parent=39 // pred_fallthru
        _
    $region40: #{model_forward.2} parent=5 // pred_fallthru
      _
    %p1082 = scmp.le.s32.totalorder 2, %s11
    // Predicated region
    $region45: #{model_forward.2} parent=5 // pred_check
      %p1083 = pneg %p1082
    $region46: #{model_forward.2} parent=5 // pred_check_branch
      %1085 = sbr.rel (%p1083) target = $region48
    $region47: #{model_forward.2} parent=5 // pred_region
      %s1086 = ssub.s32 %s11, 2
      // Predicated region
      $region49: #{model_forward.2} parent=47 // pred_check
        %p1087 = pneg %p182
      $region50: #{model_forward.2} parent=47 // pred_check_branch
        %1089 = sbr.rel (%p1087) target = $region52
      $region51: #{model_forward.2} parent=47 // pred_region
        %p1090 = scmp.lt.s32.totalorder %s22, 0
        %s1091 = scalar_select %p1090, %s22, 0
        %p1092 = scmp.lt.s32.totalorder %s23, 1
        %s1093 = scalar_select %p1092, %s23, 1
        %s1094 = smul.addr %s1091, 2
        %s1095 = sadd.s32 %s1093, %s1094
        %s1096 = smul.addr %s1095, 8
        %s1097 = scalar_lea.vmem %s5, %s1096
      $region52: #{model_forward.2} parent=47 // pred_fallthru
        _
    $region48: #{model_forward.2} parent=5 // pred_fallthru
      _
  $region6: #{model_forward.2} parent=0 // loop_footer
    %s15 = sadd.s32 1, %s11
  $region7: #{model_forward.2} parent=0 // loop_footer_branch
    %10 = sbr.rel target = $region3
  $region8: #{model_forward.2} parent=0 // loop_exit
    _

// kernel: model_forward.3
$region0: #{model_forward.3}
  #allocation0 [shape = 'u32[]', space=smem, size = 0x4, offset = 0x4, fixed_abs, tag = 'smem constant byte address 0x4 - core index']
  #allocation1 [shape = 'u32[144,128]{1,0:T(1,128)}', space=vmem, size = 0x12000, scoped, tag = 'internal scratch']
  #allocation2 [shape = 'f32[3,640]{1,0:T(4,128)}', space=vmem, size = 0x2800, scoped, tag = 'scratch operand']
  #allocation3 [shape = 'f32[32,512]{1,0:T(8,128)}', space=vmem, size = 0x10000, scoped, tag = 'scratch operand']
  %s0 = inlined_call_operand.vmem [shape: bf16[1,3,1152], index: 0, kind: input, shape index: {}, may-alias: {0,1}]
  %s1 = inlined_call_operand.vmem [shape: bf16[1,3,1152], index: 1, kind: input, shape index: {}, may-alias: {0,1}]
  %s2 = inlined_call_operand.vmem [shape: f32[8,32], index: 2, kind: input, shape index: {}]
  %s3 = inlined_call_operand.vmem [shape: f32[8,1], index: 3, kind: input, shape index: {}]
  %s4 = inlined_call_operand.vmem [shape: bf16[3,1024], index: 4, kind: input, shape index: {}]
  %s5 = inlined_call_operand.vmem [shape: f32[8,1], index: 5, kind: input, shape index: {}]
  %s6 = inlined_call_operand.vmem [shape: f32[8,1], index: 6, kind: input, shape index: {}]
  %s7 = inlined_call_operand.vmem [shape: f32[1,8,1024], index: 7, kind: output, shape index: {}]
  %s8 = sld [smem:[#allocation0]]
  $region61: #{model_forward.3} parent=0
    _
  %s10 = ssub.s32 1, %s8
  %s11 = scalar_select 0, %s10, %s8
  loop: start=0, step=1, limit=4
  $region2: #{model_forward.3} parent=0 // loop_pre_header
    _
  $region3: #{model_forward.3} parent=0 // loop_header
    %s13 = sphi 0, %s17
    %p14 = scmp.ge.s32.totalorder %s13, 4
    %s20 = sphi 0, %s32
    %s21 = sphi 0, %s28
    %s22 = sphi 0, %s20
    %s23 = sphi 0, %s21
    %s24 = sphi 0, %s22
    %s25 = sphi 0, %s23
    %s37 = sphi 0, %s39
    %s40 = sphi 0, %s37
    %s41 = sphi 0, %s40
    %s57 = sphi 0, %s41
    %s69 = sphi 0, %s71
    %s72 = sphi 0, %s69
    %s73 = sphi 0, %s72
    %s89 = sphi 0, %s73
    %s93 = sphi 0, %s93
    %s95 = sphi 0, %s93
    %s96 = sphi 0, %s95
    %s110 = sphi 0, %s96
    %s114 = sphi 0, %s114
    %s116 = sphi 0, %s114
    %s117 = sphi 0, %s116
    %s131 = sphi 0, %s117
    %s137 = sphi 0, %s139
    %s140 = sphi 0, %s137
    %s141 = sphi 0, %s140
    %s157 = sphi 0, %s141
    %s161 = sphi 0, %s161
    %s163 = sphi 0, %s161
    %s164 = sphi 0, %s163
    %s178 = sphi 0, %s164
    %s182 = sphi 0, %s182
    %s184 = sphi 0, %s182
    %s185 = sphi 0, %s184
    %s199 = sphi 0, %s185
    %s207 = sphi 0, %s209
    %s210 = sphi 0, %s207
    %s211 = sphi 0, %s210
    %s227 = sphi 0, %s211
  $region4: #{model_forward.3} parent=0 // loop_header_branch
    %16 = sbr.rel (%p14) target = $region8
  $region5: #{model_forward.3} parent=0 // loop_body
    %s18 = ssub.s32 %s13, 1
    %s19 = ssub.s32 %s13, 2
    %s26 = sadd.s32 1, %s21
    %p27 = scmp.ge.s32.totalorder %s26, 2
    %s28 = scalar_select %p27, 0, %s26
    %s29 = sadd.s32 1, %s20
    %s30 = scalar_select %p27, %s29, %s20
    %p31 = scmp.ge.s32.totalorder %s30, 1
    %s32 = scalar_select %p31, 0, %s30
    %s33 = ssub.s32 %s20, %s32
    %s34 = ssub.s32 %s21, %s28
    %s35 = sor.u32 %s33, %s34
    %p36 = scmp.eq.s32.totalorder %s35, 0
    %s38 = sadd.s32 %s37, 1
    %s39 = scalar_select %p36, %s37, %s38
    %p42 = pneg %p36
    %p43 = scmp.eq.s32.totalorder %s13, 1
    %p44 = por %p42, %p43
    %p45 = scmp.ne.s32.totalorder %s37, %s40
    %p46 = scmp.eq.s32.totalorder %s13, 0
    %p47 = por %p45, %p46
    %p48 = scmp.ne.s32.totalorder %s37, %s40
    %p49 = scmp.eq.s32.totalorder %s18, 1
    %p50 = por %p48, %p49
    %p51 = scmp.ne.s32.totalorder %s40, %s41
    %p52 = scmp.eq.s32.totalorder %s18, 0
    %p53 = por %p51, %p52
    %p54 = scmp.ne.s32.totalorder %s40, %s41
    %p55 = scmp.eq.s32.totalorder %s19, 1
    %p56 = por %p54, %p55
    %p58 = scmp.ne.s32.totalorder %s41, %s57
    %p59 = scmp.eq.s32.totalorder %s19, 0
    %p60 = por %p58, %p59
    %s61 = sadd.s32 %s21, 1
    %s62 = smul.u32 %s61, 4
    %s63 = sadd.s32 %s28, 1
    %s64 = smul.u32 %s63, 4
    %s65 = ssub.s32 %s20, %s32
    %s66 = ssub.s32 %s62, %s64
    %s67 = sor.u32 %s65, %s66
    %p68 = scmp.eq.s32.totalorder %s67, 0
    %s70 = sadd.s32 %s69, 1
    %s71 = scalar_select %p68, %s69, %s70
    %p74 = pneg %p68
    %p75 = scmp.eq.s32.totalorder %s13, 1
    %p76 = por %p74, %p75
    %p77 = scmp.ne.s32.totalorder %s69, %s72
    %p78 = scmp.eq.s32.totalorder %s13, 0
    %p79 = por %p77, %p78
    %p80 = scmp.ne.s32.totalorder %s69, %s72
    %p81 = scmp.eq.s32.totalorder %s18, 1
    %p82 = por %p80, %p81
    %p83 = scmp.ne.s32.totalorder %s72, %s73
    %p84 = scmp.eq.s32.totalorder %s18, 0
    %p85 = por %p83, %p84
    %p86 = scmp.ne.s32.totalorder %s72, %s73
    %p87 = scmp.eq.s32.totalorder %s19, 1
    %p88 = por %p86, %p87
    %p90 = scmp.ne.s32.totalorder %s73, %s89
    %p91 = scmp.eq.s32.totalorder %s19, 0
    %p92 = por %p90, %p91
    %s94 = sadd.s32 %s93, 1
    %p97 = scmp.eq.s32.totalorder %s13, 1
    %p98 = scmp.ne.s32.totalorder %s93, %s95
    %p99 = scmp.eq.s32.totalorder %s13, 0
    %p100 = por %p98, %p99
    %p101 = scmp.ne.s32.totalorder %s93, %s95
    %p102 = scmp.eq.s32.totalorder %s18, 1
    %p103 = por %p101, %p102
    %p104 = scmp.ne.s32.totalorder %s95, %s96
    %p105 = scmp.eq.s32.totalorder %s18, 0
    %p106 = por %p104, %p105
    %p107 = scmp.ne.s32.totalorder %s95, %s96
    %p108 = scmp.eq.s32.totalorder %s19, 1
    %p109 = por %p107, %p108
    %p111 = scmp.ne.s32.totalorder %s96, %s110
    %p112 = scmp.eq.s32.totalorder %s19, 0
    %p113 = por %p111, %p112
    %s115 = sadd.s32 %s114, 1
    %p118 = scmp.eq.s32.totalorder %s13, 1
    %p119 = scmp.ne.s32.totalorder %s114, %s116
    %p120 = scmp.eq.s32.totalorder %s13, 0
    %p121 = por %p119, %p120
    %p122 = scmp.ne.s32.totalorder %s114, %s116
    %p123 = scmp.eq.s32.totalorder %s18, 1
    %p124 = por %p122, %p123
    %p125 = scmp.ne.s32.totalorder %s116, %s117
    %p126 = scmp.eq.s32.totalorder %s18, 0
    %p127 = por %p125, %p126
    %p128 = scmp.ne.s32.totalorder %s116, %s117
    %p129 = scmp.eq.s32.totalorder %s19, 1
    %p130 = por %p128, %p129
    %p132 = scmp.ne.s32.totalorder %s117, %s131
    %p133 = scmp.eq.s32.totalorder %s19, 0
    %p134 = por %p132, %p133
    %s135 = ssub.s32 %s21, %s28
    %p136 = scmp.eq.s32.totalorder %s135, 0
    %s138 = sadd.s32 %s137, 1
    %s139 = scalar_select %p136, %s137, %s138
    %p142 = pneg %p136
    %p143 = scmp.eq.s32.totalorder %s13, 1
    %p144 = por %p142, %p143
    %p145 = scmp.ne.s32.totalorder %s137, %s140
    %p146 = scmp.eq.s32.totalorder %s13, 0
    %p147 = por %p145, %p146
    %p148 = scmp.ne.s32.totalorder %s137, %s140
    %p149 = scmp.eq.s32.totalorder %s18, 1
    %p150 = por %p148, %p149
    %p151 = scmp.ne.s32.totalorder %s140, %s141
    %p152 = scmp.eq.s32.totalorder %s18, 0
    %p153 = por %p151, %p152
    %p154 = scmp.ne.s32.totalorder %s140, %s141
    %p155 = scmp.eq.s32.totalorder %s19, 1
    %p156 = por %p154, %p155
    %p158 = scmp.ne.s32.totalorder %s141, %s157
    %p159 = scmp.eq.s32.totalorder %s19, 0
    %p160 = por %p158, %p159
    %s162 = sadd.s32 %s161, 1
    %p165 = scmp.eq.s32.totalorder %s13, 1
    %p166 = scmp.ne.s32.totalorder %s161, %s163
    %p167 = scmp.eq.s32.totalorder %s13, 0
    %p168 = por %p166, %p167
    %p169 = scmp.ne.s32.totalorder %s161, %s163
    %p170 = scmp.eq.s32.totalorder %s18, 1
    %p171 = por %p169, %p170
    %p172 = scmp.ne.s32.totalorder %s163, %s164
    %p173 = scmp.eq.s32.totalorder %s18, 0
    %p174 = por %p172, %p173
    %p175 = scmp.ne.s32.totalorder %s163, %s164
    %p176 = scmp.eq.s32.totalorder %s19, 1
    %p177 = por %p175, %p176
    %p179 = scmp.ne.s32.totalorder %s164, %s178
    %p180 = scmp.eq.s32.totalorder %s19, 0
    %p181 = por %p179, %p180
    %s183 = sadd.s32 %s182, 1
    %p186 = scmp.eq.s32.totalorder %s13, 1
    %p187 = scmp.ne.s32.totalorder %s182, %s184
    %p188 = scmp.eq.s32.totalorder %s13, 0
    %p189 = por %p187, %p188
    %p190 = scmp.ne.s32.totalorder %s182, %s184
    %p191 = scmp.eq.s32.totalorder %s18, 1
    %p192 = por %p190, %p191
    %p193 = scmp.ne.s32.totalorder %s184, %s185
    %p194 = scmp.eq.s32.totalorder %s18, 0
    %p195 = por %p193, %p194
    %p196 = scmp.ne.s32.totalorder %s184, %s185
    %p197 = scmp.eq.s32.totalorder %s19, 1
    %p198 = por %p196, %p197
    %p200 = scmp.ne.s32.totalorder %s185, %s199
    %p201 = scmp.eq.s32.totalorder %s19, 0
    %p202 = por %p200, %p201
    %s203 = ssub.s32 %s20, %s32
    %s204 = ssub.s32 %s21, %s28
    %s205 = sor.u32 %s203, %s204
    %p206 = scmp.eq.s32.totalorder %s205, 0
    %s208 = sadd.s32 %s207, 1
    %s209 = scalar_select %p206, %s207, %s208
    %p212 = pneg %p206
    %p213 = scmp.eq.s32.totalorder %s13, 1
    %p214 = por %p212, %p213
    %p215 = scmp.ne.s32.totalorder %s207, %s210
    %p216 = scmp.eq.s32.totalorder %s13, 0
    %p217 = por %p215, %p216
    %p218 = scmp.ne.s32.totalorder %s207, %s210
    %p219 = scmp.eq.s32.totalorder %s18, 1
    %p220 = por %p218, %p219
    %p221 = scmp.ne.s32.totalorder %s210, %s211
    %p222 = scmp.eq.s32.totalorder %s18, 0
    %p223 = por %p221, %p222
    %p224 = scmp.ne.s32.totalorder %s210, %s211
    %p225 = scmp.eq.s32.totalorder %s19, 1
    %p226 = por %p224, %p225
    %p228 = scmp.ne.s32.totalorder %s211, %s227
    %p229 = scmp.eq.s32.totalorder %s19, 0
    %p230 = por %p228, %p229
    %p231 = scmp.le.s32.totalorder 1, %s13
    %p232 = scmp.lt.s32.totalorder %s13, 3
    %p233 = pnand %p231, %p232
    %p234 = pneg %p233
    // Predicated region
    $region9: #{model_forward.3} parent=5 // pred_check
      _
    $region10: #{model_forward.3} parent=5 // pred_check_branch
      %236 = sbr.rel (%p233) target = $region12
    $region11: #{model_forward.3} parent=5 // pred_region
      %s237 = ssub.s32 %s13, 1
      // Predicated region
      $region13: #{model_forward.3} parent=11 // pred_check
        %p238 = pneg %p106
      $region14: #{model_forward.3} parent=11 // pred_check_branch
        %240 = sbr.rel (%p238) target = $region16
      $region15: #{model_forward.3} parent=11 // pred_region
        _
      $region16: #{model_forward.3} parent=11 // pred_fallthru
        _
      // Predicated region
      $region17: #{model_forward.3} parent=11 // pred_check
        %p241 = pneg %p127
      $region18: #{model_forward.3} parent=11 // pred_check_branch
        %243 = sbr.rel (%p241) target = $region20
      $region19: #{model_forward.3} parent=11 // pred_region
        _
      $region20: #{model_forward.3} parent=11 // pred_fallthru
        _
      // Predicated region
      $region21: #{model_forward.3} parent=11 // pred_check
        %p244 = pneg %p174
      $region22: #{model_forward.3} parent=11 // pred_check_branch
        %246 = sbr.rel (%p244) target = $region24
      $region23: #{model_forward.3} parent=11 // pred_region
        _
      $region24: #{model_forward.3} parent=11 // pred_fallthru
        _
      // Predicated region
      $region25: #{model_forward.3} parent=11 // pred_check
        %p247 = pneg %p195
      $region26: #{model_forward.3} parent=11 // pred_check_branch
        %249 = sbr.rel (%p247) target = $region28
      $region27: #{model_forward.3} parent=11 // pred_region
        _
      $region28: #{model_forward.3} parent=11 // pred_fallthru
        _
    $region12: #{model_forward.3} parent=5 // pred_fallthru
      _
    %p250 = scmp.lt.s32.totalorder %s13, 2
    // Predicated region
    $region29: #{model_forward.3} parent=5 // pred_check
      %p251 = pneg %p250
    $region30: #{model_forward.3} parent=5 // pred_check_branch
      %253 = sbr.rel (%p251) target = $region32
    $region31: #{model_forward.3} parent=5 // pred_region
      // Predicated region
      $region33: #{model_forward.3} parent=31 // pred_check
        %p254 = pneg %p47
      $region34: #{model_forward.3} parent=31 // pred_check_branch
        %256 = sbr.rel (%p254) target = $region36
      $region35: #{model_forward.3} parent=31 // pred_region
        %s257 = smul.u32 4, %s21
        %s258 = ssub.s32 9, %s257
        %p259 = scmp.lt.s32.totalorder %s258, 4
        %s260 = scalar_select %p259, %s258, 4
        %s261 = smul.u32 32, %s260
        %p262 = scmp.lt.s32.totalorder %s20, 0
        %s263 = scalar_select %p262, %s20, 0
        %p264 = scmp.lt.s32.totalorder %s257, 8
        %s265 = scalar_select %p264, %s257, 8
        %s266 = smul.addr %s263, 9
        %s267 = sadd.s32 %s265, %s266
        %s268 = smul.addr %s267, 2
        %s269 = scalar_lea.vmem %s0, %s268
        %s270 = smul.u32 4, %s21
        %s271 = ssub.s32 9, %s270
        %p272 = scmp.lt.s32.totalorder %s271, 4
        %s273 = scalar_select %p272, %s271, 4
        %s274 = smul.u32 32, %s273
      $region36: #{model_forward.3} parent=31 // pred_fallthru
        _
      // Predicated region
      $region37: #{model_forward.3} parent=31 // pred_check
        %p275 = pneg %p79
      $region38: #{model_forward.3} parent=31 // pred_check_branch
        %277 = sbr.rel (%p275) target = $region40
      $region39: #{model_forward.3} parent=31 // pred_region
        %s278 = sadd.s32 %s21, 1
        %s279 = smul.u32 %s278, 4
        %p280 = scmp.lt.s32.totalorder %s20, 0
        %s281 = scalar_select %p280, %s20, 0
        %p282 = scmp.lt.s32.totalorder %s279, 8
        %s283 = scalar_select %p282, %s279, 8
        %s284 = smul.addr %s281, 9
        %s285 = sadd.s32 %s283, %s284
        %s286 = smul.addr %s285, 2
        %s287 = scalar_lea.vmem %s1, %s286
        %s288 = sadd.s32 %s21, 1
        %s289 = smul.u32 %s288, 4
      $region40: #{model_forward.3} parent=31 // pred_fallthru
        _
      // Predicated region
      $region41: #{model_forward.3} parent=31 // pred_check
        %p290 = pneg %p147
      $region42: #{model_forward.3} parent=31 // pred_check_branch
        %292 = sbr.rel (%p290) target = $region44
      $region43: #{model_forward.3} parent=31 // pred_region
        %s293 = smul.u32 4, %s21
        %p294 = scmp.lt.s32.totalorder %s293, 7
        %s295 = scalar_select %p294, %s293, 7
        %s296 = smul.addr %s295, 2
        %s297 = scalar_lea.vmem %s4, %s296
        %s298 = smul.u32 4, %s21
      $region44: #{model_forward.3} parent=31 // pred_fallthru
        _
    $region32: #{model_forward.3} parent=5 // pred_fallthru
      _
    %p299 = scmp.le.s32.totalorder 1, %s13
    %p300 = scmp.lt.s32.totalorder %s13, 3
    %p301 = pnand %p299, %p300
    %p302 = pneg %p301
    // Predicated region
    $region45: #{model_forward.3} parent=5 // pred_check
      _
    $region46: #{model_forward.3} parent=5 // pred_check_branch
      %304 = sbr.rel (%p301) target = $region48
    $region47: #{model_forward.3} parent=5 // pred_region
      %s305 = ssub.s32 %s13, 1
      %s306 = smul.u32 4, %s23
      %s307 = ssub.s32 9, %s306
      %p308 = scmp.lt.s32.totalorder %s307, 4
      %s309 = scalar_select %p308, %s307, 4
      %s310 = smul.u32 32, %s309
      %p311 = scmp.lt.s32.totalorder %s22, 0
      %s312 = scalar_select %p311, %s22, 0
      %p313 = scmp.lt.s32.totalorder %s306, 8
      %s314 = scalar_select %p313, %s306, 8
      %s315 = smul.addr %s312, 9
      %s316 = sadd.s32 %s314, %s315
      %s317 = smul.addr %s316, 2
      %s318 = scalar_lea.vmem %s0, %s317
      %p319 = pneg %p53
      %p320 = pneg %p50
      %s321 = sadd.s32 %s23, 1
      %s322 = smul.u32 %s321, 4
      %p323 = scmp.lt.s32.totalorder %s22, 0
      %s324 = scalar_select %p323, %s22, 0
      %p325 = scmp.lt.s32.totalorder %s322, 8
      %s326 = scalar_select %p325, %s322, 8
      %s327 = smul.addr %s324, 9
      %s328 = sadd.s32 %s326, %s327
      %s329 = smul.addr %s328, 2
      %s330 = scalar_lea.vmem %s1, %s329
      %p331 = pneg %p85
      %p332 = pneg %p82
      %p333 = pneg %p106
      %p334 = pneg %p103
      %p335 = pneg %p127
      %p336 = pneg %p124
      %s337 = smul.u32 4, %s23
      %p338 = scmp.lt.s32.totalorder %s337, 7
      %s339 = scalar_select %p338, %s337, 7
      %s340 = smul.addr %s339, 2
      %s341 = scalar_lea.vmem %s4, %s340
      %p342 = pneg %p153
      %p343 = pneg %p150
      %p344 = pneg %p174
      %p345 = pneg %p171
      %p346 = pneg %p195
      %p347 = pneg %p192
      %p348 = pneg %p223
      %p349 = pneg %p220
      %s350 = smul.u32 4, %s23
      %p351 = scmp.lt.s32.totalorder %s22, 0
      %s352 = scalar_select %p351, %s22, 0
      %p353 = scmp.lt.s32.totalorder %s350, 7
      %s354 = scalar_select %p353, %s350, 7
      %s355 = smul.addr %s352, 8
      %s356 = sadd.s32 %s354, %s355
      %s357 = smul.addr %s356, 8
      %s358 = scalar_lea.vmem %s7, %s357
      %s359 = smul.u32 4, %s23
      %s360 = ssub.s32 9, %s359
      %p361 = scmp.lt.s32.totalorder %s360, 4
      %s362 = scalar_select %p361, %s360, 4
      %s363 = smul.u32 32, %s362
      %p364 = scmp.lt.s32.totalorder %s22, 0
      %s365 = scalar_select %p364, %s22, 0
      %p366 = scmp.lt.s32.totalorder %s359, 8
      %s367 = scalar_select %p366, %s359, 8
      %s368 = smul.addr %s365, 9
      %s369 = sadd.s32 %s367, %s368
      %s370 = smul.addr %s369, 2
      %s371 = scalar_lea.vmem %s0, %s370
      %s372 = smul.u32 4, %s23
      %s373 = ssub.s32 9, %s372
      %p374 = scmp.lt.s32.totalorder %s373, 4
      %s375 = scalar_select %p374, %s373, 4
      %s376 = smul.u32 32, %s375
      %s377 = sadd.s32 %s23, 1
      %s378 = smul.u32 %s377, 4
      %p379 = scmp.lt.s32.totalorder %s22, 0
      %s380 = scalar_select %p379, %s22, 0
      %p381 = scmp.lt.s32.totalorder %s378, 8
      %s382 = scalar_select %p381, %s378, 8
      %s383 = smul.addr %s380, 9
      %s384 = sadd.s32 %s382, %s383
      %s385 = smul.addr %s384, 2
      %s386 = scalar_lea.vmem %s1, %s385
      %s387 = sadd.s32 %s23, 1
      %s388 = smul.u32 %s387, 4
      %s389 = smul.u32 4, %s23
      %p390 = scmp.lt.s32.totalorder %s389, 7
      %s391 = scalar_select %p390, %s389, 7
      %s392 = smul.addr %s391, 2
      %s393 = scalar_lea.vmem %s4, %s392
      %s394 = smul.u32 4, %s23
      %s395 = smul.u32 4, %s23
      %p396 = scmp.lt.s32.totalorder %s22, 0
      %s397 = scalar_select %p396, %s22, 0
      %p398 = scmp.lt.s32.totalorder %s395, 7
      %s399 = scalar_select %p398, %s395, 7
      %s400 = smul.addr %s397, 8
      %s401 = sadd.s32 %s399, %s400
      %s402 = smul.addr %s401, 8
      %s403 = scalar_lea.vmem %s7, %s402
      %s404 = smul.u32 4, %s23
      %v405 = vld [vmem:[%s371] sm:$0xff]
      %v406 = vunpack.c.l.bf16 %v405
      %v407 = vunpack.c.h.bf16 %v405
      %408 = vst [vmem:[#allocation2] sm:$0x77] %v406
      %409 = vst [vmem:[#allocation2 + $0x8] sm:$0x77] %v407
      %v410 = vld [vmem:[%s386] sm:$0x3]
      %v411 = vunpack.c.l.bf16 %v410
      %412 = vst [vmem:[#allocation2 + $0x10] sm:$0x7] %v411
      %v413 = vld [vmem:[%s393] sm:$0x55]
      %v414 = vunpack.c.l.bf16 %v413
      %v415 = vunpack.c.h.bf16 %v413
      %416 = vst [vmem:[#allocation3 + $0x60] sm:$0xf8] 0.0
      %417 = vst [vmem:[#allocation3 + $0x68] sm:$0xf8] 0.0
      %418 = vst [vmem:[#allocation3 + $0x70] sm:$0xf8] 0.0
      %419 = vst [vmem:[#allocation3 + $0x78] sm:$0xf8] 0.0
      %v420 = vld [vmem:[#allocation2] sm:$0x77]
      %v421 = vld [vmem:[#allocation2 + $0x8] sm:$0x77]
      %v424 = vlaneseq
      %v425 = vshrl.u32 %v424, 7
      %v426 = vsub.s32 0, %v425
      %v427 = vrot.slane %v414, %v426
      %v428 = vlaneseq
      %v429 = vshrl.u32 %v428, 7
      %v430 = vsub.s32 4, %v429
      %v431 = vrot.slane %v414, %v430
      %v432 = vlaneseq
      %v433 = vshrl.u32 %v432, 7
      %v434 = vsub.s32 0, %v433
      %v435 = vrot.slane %v415, %v434
      %v436 = vlaneseq
      %v437 = vshrl.u32 %v436, 7
      %v438 = vsub.s32 4, %v437
      %v439 = vrot.slane %v415, %v438
      %v444 = vlaneseq
      %v445 = vshrl.u32 %v444, 7
      %v446 = vsub.s32 0, %v445
      %v447 = vrot.slane %v427, %v446
      %v448 = vlaneseq
      %v449 = vshrl.u32 %v448, 7
      %v450 = vsub.s32 0, %v449
      %v451 = vrot.slane %v431, %v450
      %v452 = vlaneseq
      %v453 = vshrl.u32 %v452, 7
      %v454 = vsub.s32 0, %v453
      %v455 = vrot.slane %v435, %v454
      %v456 = vlaneseq
      %v457 = vshrl.u32 %v456, 7
      %v458 = vsub.s32 0, %v457
      %v459 = vrot.slane %v439, %v458
      %v464 = vcombine.low %v447, %v451
      %v465 = vcombine.low %v455, %v459
      %v468 = vmul.f32 %v420, %v464
      %v469 = vmul.f32 %v421, %v465
      %v472 = vcombine.high %v468, %v468
      %v473 = vcombine.high %v469, %v469
      %476 = vst [vmem:[#allocation3] sm:$0x7] %v468
      %477 = vst [vmem:[#allocation3 + $0x8] sm:$0x7] %v472
      %478 = vst [vmem:[#allocation3 + $0x10] sm:$0x7] %v469
      %479 = vst [vmem:[#allocation3 + $0x18] sm:$0x7] %v473
      %v480 = vld [vmem:[#allocation2] sm:$0x77]
      %v481 = vld [vmem:[#allocation2 + $0x8] sm:$0x77]
      %v482 = vld [vmem:[#allocation2 + $0x10] sm:$0x7]
      %v486 = vcombine.high %v480, %v480
      %v487 = vcombine.high %v481, %v481
      %v488 = vrot.slane %v480, 5
      %v489 = vrot.slane %v486, 5
      %v490 = vrot.slane %v481, 5
      %v491 = vrot.slane %v487, 5
      %v492 = vrot.slane %v482, 5
      %493 = vrot.lane.b32.xlu0 %v488, 127
      %v494 = vpop.permute.xlu0 %493
      %495 = vrot.lane.b32.xlu0 %v489, 127
      %v496 = vpop.permute.xlu0 %495
      %497 = vrot.lane.b32.xlu0 %v490, 127
      %v498 = vpop.permute.xlu0 %497
      %499 = vrot.lane.b32.xlu0 %v491, 127
      %v500 = vpop.permute.xlu0 %499
      %501 = vrot.lane.b32.xlu0 %v492, 127
      %v502 = vpop.permute.xlu0 %501
      %vm503 = vcmask 1039360
      %v504 = vsel %vm503, %v494, %v496
      %v505 = vsel %vm503, %v496, %v498
      %v506 = vsel %vm503, %v498, %v500
      %v507 = vsel %vm503, %v500, %v502
      %512 = vst [vmem:[#allocation3] sm:$0x38] %v504
      %513 = vst [vmem:[#allocation3 + $0x8] sm:$0x38] %v505
      %514 = vst [vmem:[#allocation3 + $0x10] sm:$0x38] %v506
      %515 = vst [vmem:[#allocation3 + $0x18] sm:$0x38] %v507
      %v516 = vld [vmem:[#allocation2] sm:$0x77]
      %v517 = vld [vmem:[#allocation2 + $0x8] sm:$0x77]
      %v518 = vld [vmem:[#allocation2 + $0x10] sm:$0x7]
      %v519 = vlaneseq
      %v520 = vshrl.u32 %v519, 7
      %v521 = vsub.s32 1, %v520
      %v522 = vrot.slane %v414, %v521
      %v523 = vlaneseq
      %v524 = vshrl.u32 %v523, 7
      %v525 = vsub.s32 5, %v524
      %v526 = vrot.slane %v414, %v525
      %v527 = vlaneseq
      %v528 = vshrl.u32 %v527, 7
      %v529 = vsub.s32 1, %v528
      %v530 = vrot.slane %v415, %v529
      %v531 = vlaneseq
      %v532 = vshrl.u32 %v531, 7
      %v533 = vsub.s32 5, %v532
      %v534 = vrot.slane %v415, %v533
      %v539 = vlaneseq
      %v540 = vshrl.u32 %v539, 7
      %v541 = vsub.s32 1, %v540
      %v542 = vrot.slane %v522, %v541
      %v543 = vlaneseq
      %v544 = vshrl.u32 %v543, 7
      %v545 = vsub.s32 1, %v544
      %v546 = vrot.slane %v526, %v545
      %v547 = vlaneseq
      %v548 = vshrl.u32 %v547, 7
      %v549 = vsub.s32 1, %v548
      %v550 = vrot.slane %v530, %v549
      %v551 = vlaneseq
      %v552 = vshrl.u32 %v551, 7
      %v553 = vsub.s32 1, %v552
      %v554 = vrot.slane %v534, %v553
      %v559 = vcombine.low %v542, %v546
      %v560 = vcombine.low %v550, %v554
      %561 = vrot.lane.b32.xlu0 %v559, 2
      %v562 = vpop.permute.xlu0 %561
      %563 = vrot.lane.b32.xlu0 %v560, 2
      %v564 = vpop.permute.xlu0 %563
      %v565 = vrot.slane %v562, 4
      %v566 = vrot.slane %v564, 4
      %vm567 = vcmask 15360
      %v568 = vsel %vm567, %v565, %v562
      %vm569 = vcmask 1043456
      %v570 = vsel %vm569, %v565, %v566
      %v571 = vsel %vm567, %v570, %v564
      %v575 = vmul.f32 %v516, %v568
      %v576 = vmul.f32 %v517, %v571
      %v577 = vmul.f32 %v518, %v566
      %v581 = vcombine.high %v575, %v575
      %v582 = vcombine.high %v576, %v576
      %v583 = vrot.slane %v575, 2
      %v584 = vrot.slane %v581, 2
      %v585 = vrot.slane %v576, 2
      %v586 = vrot.slane %v582, 2
      %v587 = vrot.slane %v577, 2
      %588 = vrot.lane.b32.xlu0 %v583, 126
      %v589 = vpop.permute.xlu0 %588
      %590 = vrot.lane.b32.xlu0 %v584, 126
      %v591 = vpop.permute.xlu0 %590
      %592 = vrot.lane.b32.xlu0 %v585, 126
      %v593 = vpop.permute.xlu0 %592
      %594 = vrot.lane.b32.xlu0 %v586, 126
      %v595 = vpop.permute.xlu0 %594
      %596 = vrot.lane.b32.xlu0 %v587, 126
      %v597 = vpop.permute.xlu0 %596
      %vm598 = vcmask 1031168
      %v599 = vsel %vm598, %v589, %v591
      %v600 = vsel %vm598, %v591, %v593
      %v601 = vsel %vm598, %v593, %v595
      %v602 = vsel %vm598, %v595, %v597
      %607 = vst [vmem:[#allocation3] sm:$0xc0] %v599
      %608 = vst [vmem:[#allocation3 + $0x8] sm:$0xc0] %v600
      %609 = vst [vmem:[#allocation3 + $0x10] sm:$0xc0] %v601
      %610 = vst [vmem:[#allocation3 + $0x18] sm:$0xc0] %v602
      %611 = vst [vmem:[#allocation3 + $0x20] sm:$0x1] %v599
      %612 = vst [vmem:[#allocation3 + $0x28] sm:$0x1] %v600
      %613 = vst [vmem:[#allocation3 + $0x30] sm:$0x1] %v601
      %614 = vst [vmem:[#allocation3 + $0x38] sm:$0x1] %v602
      %v615 = vld [vmem:[#allocation2] sm:$0x77]
      %v616 = vld [vmem:[#allocation2 + $0x8] sm:$0x77]
      %v617 = vld [vmem:[#allocation2 + $0x10] sm:$0x7]
      %618 = vrot.lane.b32.xlu0 %v464, 32
      %v619 = vpop.permute.xlu0 %618
      %620 = vrot.lane.b32.xlu0 %v465, 32
      %v621 = vpop.permute.xlu0 %620
      %v622 = vrot.slane %v619, 4
      %v623 = vrot.slane %v621, 4
      %vm624 = vcmask 261120
      %v625 = vsel %vm624, %v622, %v619
      %v626 = vsel %vm569, %v622, %v623
      %v627 = vsel %vm624, %v626, %v621
      %v631 = vmul.f32 %v615, %v625
      %v632 = vmul.f32 %v616, %v627
      %v633 = vmul.f32 %v617, %v623
      %v637 = vcombine.high %v631, %v631
      %v638 = vcombine.high %v632, %v632
      %v639 = vrot.slane %v631, 7
      %v640 = vrot.slane %v637, 7
      %v641 = vrot.slane %v632, 7
      %v642 = vrot.slane %v638, 7
      %v643 = vrot.slane %v633, 7
      %644 = vrot.lane.b32.xlu0 %v639, 96
      %v645 = vpop.permute.xlu0 %644
      %646 = vrot.lane.b32.xlu0 %v640, 96
      %v647 = vpop.permute.xlu0 %646
      %648 = vrot.lane.b32.xlu0 %v641, 96
      %v649 = vpop.permute.xlu0 %648
      %650 = vrot.lane.b32.xlu0 %v642, 96
      %v651 = vpop.permute.xlu0 %650
      %652 = vrot.lane.b32.xlu0 %v643, 96
      %v653 = vpop.permute.xlu0 %652
      %vm654 = vcmask 785408
      %v655 = vsel %vm654, %v645, %v647
      %v656 = vsel %vm654, %v647, %v649
      %v657 = vsel %vm654, %v649, %v651
      %v658 = vsel %vm654, %v651, %v653
      %663 = vst [vmem:[#allocation3 + $0x20] sm:$0xe] %v655
      %664 = vst [vmem:[#allocation3 + $0x28] sm:$0xe] %v656
      %665 = vst [vmem:[#allocation3 + $0x30] sm:$0xe] %v657
      %666 = vst [vmem:[#allocation3 + $0x38] sm:$0xe] %v658
      %v667 = vld [vmem:[#allocation2] sm:$0x77]
      %v668 = vld [vmem:[#allocation2 + $0x8] sm:$0x77]
      %v669 = vld [vmem:[#allocation2 + $0x10] sm:$0x7]
      %v673 = vcombine.low %v667, %v667
      %v674 = vcombine.low %v668, %v668
      %v675 = vcombine.low %v669, %v669
      %676 = vrot.lane.b32.xlu0 %v673, 95
      %v677 = vpop.permute.xlu0 %676
      %678 = vrot.lane.b32.xlu0 %v667, 95
      %v679 = vpop.permute.xlu0 %678
      %680 = vrot.lane.b32.xlu0 %v674, 95
      %v681 = vpop.permute.xlu0 %680
      %682 = vrot.lane.b32.xlu0 %v668, 95
      %v683 = vpop.permute.xlu0 %682
      %684 = vrot.lane.b32.xlu0 %v675, 95
      %v685 = vpop.permute.xlu0 %684
      %vm686 = vcmask 777216
      %v687 = vsel %vm686, %v677, %v679
      %v688 = vsel %vm686, %v679, %v681
      %v689 = vsel %vm686, %v681, %v683
      %v690 = vsel %vm686, %v683, %v685
      %695 = vst [vmem:[#allocation3 + $0x20] sm:$0x70] %v687
      %696 = vst [vmem:[#allocation3 + $0x28] sm:$0x70] %v688
      %697 = vst [vmem:[#allocation3 + $0x30] sm:$0x70] %v689
      %698 = vst [vmem:[#allocation3 + $0x38] sm:$0x70] %v690
      %v699 = vld [vmem:[#allocation2] sm:$0x77]
      %v700 = vld [vmem:[#allocation2 + $0x8] sm:$0x77]
      %v701 = vld [vmem:[#allocation2 + $0x10] sm:$0x7]
      %702 = vrot.lane.b32.xlu0 %v559, 34
      %v703 = vpop.permute.xlu0 %702
      %704 = vrot.lane.b32.xlu0 %v560, 34
      %v705 = vpop.permute.xlu0 %704
      %v706 = vrot.slane %v703, 4
      %v707 = vrot.slane %v705, 4
      %vm708 = vcmask 277504
      %v709 = vsel %vm708, %v706, %v703
      %v710 = vsel %vm569, %v706, %v707
      %v711 = vsel %vm708, %v710, %v705
      %v715 = vmul.f32 %v699, %v709
      %v716 = vmul.f32 %v700, %v711
      %v717 = vmul.f32 %v701, %v707
      %v721 = vcombine.high %v715, %v715
      %v722 = vcombine.high %v716, %v716
      %v723 = vrot.slane %v715, 1
      %v724 = vrot.slane %v721, 1
      %v725 = vrot.slane %v716, 1
      %v726 = vrot.slane %v722, 1
      %v727 = vrot.slane %v717, 1
      %728 = vrot.lane.b32.xlu0 %v723, 94
      %v729 = vpop.permute.xlu0 %728
      %730 = vrot.lane.b32.xlu0 %v724, 94
      %v731 = vpop.permute.xlu0 %730
      %732 = vrot.lane.b32.xlu0 %v725, 94
      %v733 = vpop.permute.xlu0 %732
      %734 = vrot.lane.b32.xlu0 %v726, 94
      %v735 = vpop.permute.xlu0 %734
      %736 = vrot.lane.b32.xlu0 %v727, 94
      %v737 = vpop.permute.xlu0 %736
      %vm738 = vcmask 769024
      %v739 = vsel %vm738, %v729, %v731
      %v740 = vsel %vm738, %v731, %v733
      %v741 = vsel %vm738, %v733, %v735
      %v742 = vsel %vm738, %v735, %v737
      %747 = vst [vmem:[#allocation3 + $0x20] sm:$0x80] %v739
      %748 = vst [vmem:[#allocation3 + $0x28] sm:$0x80] %v740
      %749 = vst [vmem:[#allocation3 + $0x30] sm:$0x80] %v741
      %750 = vst [vmem:[#allocation3 + $0x38] sm:$0x80] %v742
      %751 = vst [vmem:[#allocation3 + $0x40] sm:$0x3] %v739
      %752 = vst [vmem:[#allocation3 + $0x48] sm:$0x3] %v740
      %753 = vst [vmem:[#allocation3 + $0x50] sm:$0x3] %v741
      %754 = vst [vmem:[#allocation3 + $0x58] sm:$0x3] %v742
      %v755 = vld [vmem:[#allocation2] sm:$0x77]
      %v756 = vld [vmem:[#allocation2 + $0x8] sm:$0x77]
      %v757 = vld [vmem:[#allocation2 + $0x10] sm:$0x7]
      %758 = vrot.lane.b32.xlu0 %v464, 64
      %v759 = vpop.permute.xlu0 %758
      %760 = vrot.lane.b32.xlu0 %v465, 64
      %v761 = vpop.permute.xlu0 %760
      %v762 = vrot.slane %v759, 4
      %v763 = vrot.slane %v761, 4
      %vm764 = vcmask 523264
      %v765 = vsel %vm764, %v762, %v759
      %v766 = vsel %vm569, %v762, %v763
      %v767 = vsel %vm764, %v766, %v761
      %v771 = vmul.f32 %v755, %v765
      %v772 = vmul.f32 %v756, %v767
      %v773 = vmul.f32 %v757, %v763
      %v777 = vcombine.high %v771, %v771
      %v778 = vcombine.high %v772, %v772
      %v779 = vrot.slane %v771, 6
      %v780 = vrot.slane %v777, 6
      %v781 = vrot.slane %v772, 6
      %v782 = vrot.slane %v778, 6
      %v783 = vrot.slane %v773, 6
      %784 = vrot.lane.b32.xlu0 %v779, 64
      %v785 = vpop.permute.xlu0 %784
      %786 = vrot.lane.b32.xlu0 %v780, 64
      %v787 = vpop.permute.xlu0 %786
      %788 = vrot.lane.b32.xlu0 %v781, 64
      %v789 = vpop.permute.xlu0 %788
      %790 = vrot.lane.b32.xlu0 %v782, 64
      %v791 = vpop.permute.xlu0 %790
      %792 = vrot.lane.b32.xlu0 %v783, 64
      %v793 = vpop.permute.xlu0 %792
      %v794 = vsel %vm764, %v785, %v787
      %v795 = vsel %vm764, %v787, %v789
      %v796 = vsel %vm764, %v789, %v791
      %v797 = vsel %vm764, %v791, %v793
      %802 = vst [vmem:[#allocation3 + $0x40] sm:$0x1c] %v794
      %803 = vst [vmem:[#allocation3 + $0x48] sm:$0x1c] %v795
      %804 = vst [vmem:[#allocation3 + $0x50] sm:$0x1c] %v796
      %805 = vst [vmem:[#allocation3 + $0x58] sm:$0x1c] %v797
      %v806 = vld [vmem:[#allocation2] sm:$0x77]
      %v807 = vld [vmem:[#allocation2 + $0x8] sm:$0x77]
      %v808 = vld [vmem:[#allocation2 + $0x10] sm:$0x7]
      %v812 = vcombine.high %v806, %v806
      %v813 = vcombine.high %v807, %v807
      %v814 = vrot.slane %v806, 3
      %v815 = vrot.slane %v812, 3
      %v816 = vrot.slane %v807, 3
      %v817 = vrot.slane %v813, 3
      %v818 = vrot.slane %v808, 3
      %819 = vrot.lane.b32.xlu0 %v814, 63
      %v820 = vpop.permute.xlu0 %819
      %821 = vrot.lane.b32.xlu0 %v815, 63
      %v822 = vpop.permute.xlu0 %821
      %823 = vrot.lane.b32.xlu0 %v816, 63
      %v824 = vpop.permute.xlu0 %823
      %825 = vrot.lane.b32.xlu0 %v817, 63
      %v826 = vpop.permute.xlu0 %825
      %827 = vrot.lane.b32.xlu0 %v818, 63
      %v828 = vpop.permute.xlu0 %827
      %vm829 = vcmask 515072
      %v830 = vsel %vm829, %v820, %v822
      %v831 = vsel %vm829, %v822, %v824
      %v832 = vsel %vm829, %v824, %v826
      %v833 = vsel %vm829, %v826, %v828
      %838 = vst [vmem:[#allocation3 + $0x40] sm:$0xe0] %v830
      %839 = vst [vmem:[#allocation3 + $0x48] sm:$0xe0] %v831
      %840 = vst [vmem:[#allocation3 + $0x50] sm:$0xe0] %v832
      %841 = vst [vmem:[#allocation3 + $0x58] sm:$0xe0] %v833
      %v842 = vld [vmem:[#allocation2] sm:$0x77]
      %v843 = vld [vmem:[#allocation2 + $0x8] sm:$0x77]
      %v844 = vld [vmem:[#allocation2 + $0x10] sm:$0x7]
      %845 = vrot.lane.b32.xlu0 %v559, 66
      %v846 = vpop.permute.xlu0 %845
      %847 = vrot.lane.b32.xlu0 %v560, 66
      %v848 = vpop.permute.xlu0 %847
      %v849 = vrot.slane %v846, 4
      %v850 = vrot.slane %v848, 4
      %vm851 = vcmask 539648
      %v852 = vsel %vm851, %v849, %v846
      %v853 = vsel %vm569, %v849, %v850
      %v854 = vsel %vm851, %v853, %v848
      %v858 = vmul.f32 %v842, %v852
      %v859 = vmul.f32 %v843, %v854
      %v860 = vmul.f32 %v844, %v850
      %v864 = vcombine.high %v858, %v858
      %v865 = vcombine.high %v859, %v859
      %866 = vrot.lane.b32.xlu0 %v858, 62
      %v867 = vpop.permute.xlu0 %866
      %868 = vrot.lane.b32.xlu0 %v864, 62
      %v869 = vpop.permute.xlu0 %868
      %870 = vrot.lane.b32.xlu0 %v859, 62
      %v871 = vpop.permute.xlu0 %870
      %872 = vrot.lane.b32.xlu0 %v865, 62
      %v873 = vpop.permute.xlu0 %872
      %874 = vrot.lane.b32.xlu0 %v860, 62
      %v875 = vpop.permute.xlu0 %874
      %vm876 = vcmask 506880
      %v877 = vsel %vm876, %v867, %v869
      %v878 = vsel %vm876, %v869, %v871
      %v879 = vsel %vm876, %v871, %v873
      %v880 = vsel %vm876, %v873, %v875
      %885 = vst [vmem:[#allocation3 + $0x60] sm:$0x7] %v877
      %886 = vst [vmem:[#allocation3 + $0x68] sm:$0x7] %v878
      %887 = vst [vmem:[#allocation3 + $0x70] sm:$0x7] %v879
      %888 = vst [vmem:[#allocation3 + $0x78] sm:$0x7] %v880
      %v889 = vld [vmem:[%s2] sm:$0xff]
      %v890 = vld [vmem:[#allocation3] sm:$0xff]
      %v891 = vld [vmem:[#allocation3 + $0x8] sm:$0xff]
      %v892 = vld [vmem:[#allocation3 + $0x10] sm:$0xff]
      %v893 = vld [vmem:[#allocation3 + $0x18] sm:$0xff]
      %v894 = vld [vmem:[#allocation3 + $0x20] sm:$0xff]
      %v895 = vld [vmem:[#allocation3 + $0x28] sm:$0xff]
      %v896 = vld [vmem:[#allocation3 + $0x30] sm:$0xff]
      %v897 = vld [vmem:[#allocation3 + $0x38] sm:$0xff]
      %v898 = vld [vmem:[#allocation3 + $0x40] sm:$0xff]
      %v899 = vld [vmem:[#allocation3 + $0x48] sm:$0xff]
      %v900 = vld [vmem:[#allocation3 + $0x50] sm:$0xff]
      %v901 = vld [vmem:[#allocation3 + $0x58] sm:$0xff]
      %v902 = vld [vmem:[#allocation3 + $0x60] sm:$0xff]
      %v903 = vld [vmem:[#allocation3 + $0x68] sm:$0xff]
      %v904 = vld [vmem:[#allocation3 + $0x70] sm:$0xff]
      %v905 = vld [vmem:[#allocation3 + $0x78] sm:$0xff]
      %v906 = vld [vmem:[%s3] sm:$0xff]
      %908 = vset.pattern.permute.xlu0 0
      %909 = vperm.xlu0 %908, %v906
      %v910 = vpop.permute.xlu0 %909
      %v913 = vsel %vm624, %v889, 0
      %915 = vmatprep.subr.mxu0 0.0
      %916 = vmatpush1.msra.mxu0 0.0
      %917 = vmatprep.subr.mxu0 0.0
      %918 = vmatpush1.msra.mxu0 0.0
      %919 = vmatprep.subr.mxu0 0.0
      %920 = vmatpush1.msra.mxu0 0.0
      %921 = vmatprep.subr.mxu0 0.0
      %922 = vmatpush1.msra.mxu0 0.0
      %923 = vmatprep.subr.mxu0 0.0
      %924 = vmatpush1.msra.mxu0 0.0
      %925 = vmatprep.subr.mxu0 0.0
      %926 = vmatpush1.msra.mxu0 0.0
      %927 = vmatprep.subr.mxu0 0.0
      %928 = vmatpush1.msra.mxu0 0.0
      %929 = vmatprep.subr.mxu0 0.0
      %930 = vmatpush1.msra.mxu0 0.0
      %931 = vmatprep.subr.mxu0 0.0
      %932 = vmatpush1.msra.mxu0 0.0
      %933 = vmatprep.subr.mxu0 0.0
      %934 = vmatpush1.msra.mxu0 0.0
      %935 = vmatprep.subr.mxu0 0.0
      %936 = vmatpush1.msra.mxu0 0.0
      %937 = vmatprep.subr.mxu0 0.0
      %938 = vmatpush1.msra.mxu0 0.0
      %939 = vmatprep.subr.mxu0 %v903
      %940 = vmatpush1.msra.mxu0 %v902
      %941 = vmatprep.subr.mxu0 %v899
      %942 = vmatpush1.msra.mxu0 %v898
      %943 = vmatprep.subr.mxu0 %v895
      %944 = vmatpush1.msra.mxu0 %v894
      %945 = vmatprep.subr.mxu0 %v891
      %946 = vmatpush1.msra.mxu0 %v890
      %947 = vmatprep.subr.mxu0 0.0
      %948 = vmatpush2.msra.mxu0 0.0
      %949 = vmatprep.subr.mxu0 0.0
      %950 = vmatpush2.msra.mxu0 0.0
      %951 = vmatprep.subr.mxu0 0.0
      %952 = vmatpush2.msra.mxu0 0.0
      %953 = vmatprep.subr.mxu0 0.0
      %954 = vmatpush2.msra.mxu0 0.0
      %955 = vmatprep.subr.mxu0 0.0
      %956 = vmatpush2.msra.mxu0 0.0
      %957 = vmatprep.subr.mxu0 0.0
      %958 = vmatpush2.msra.mxu0 0.0
      %959 = vmatprep.subr.mxu0 0.0
      %960 = vmatpush2.msra.mxu0 0.0
      %961 = vmatprep.subr.mxu0 0.0
      %962 = vmatpush2.msra.mxu0 0.0
      %963 = vmatprep.subr.mxu0 0.0
      %964 = vmatpush2.msra.mxu0 0.0
      %965 = vmatprep.subr.mxu0 0.0
      %966 = vmatpush2.msra.mxu0 0.0
      %967 = vmatprep.subr.mxu0 0.0
      %968 = vmatpush2.msra.mxu0 0.0
      %969 = vmatprep.subr.mxu0 0.0
      %970 = vmatpush2.msra.mxu0 0.0
      %971 = vmatprep.subr.mxu0 0.0
      %972 = vmatpush2.msra.mxu0 0.0
      %973 = vmatprep.subr.mxu0 0.0
      %974 = vmatpush2.msra.mxu0 0.0
      %975 = vmatprep.subr.mxu0 0.0
      %976 = vmatpush2.msra.mxu0 0.0
      %977 = vmatprep.subr.mxu0 0.0
      %978 = vmatpush2.msra.mxu0 0.0
      %979 = vmatprep.mubr.f32.mxu0 0.0
      %980 = vmatmul.mubr.f32.gmra.mxu0 %v913
      %v981 = vpop.f32.mrf.mxu0
      %v982 = vadd.f32 %v910, %v981
      %v983 = vpop.f32.mrf.mxu0
      %v984 = vadd.f32 %v910, %v983
      %985 = vdwg.mxu0
      %986 = vmatprep.subr.mxu0 0.0
      %987 = vmatpush1.msra.mxu0 0.0
      %988 = vmatprep.subr.mxu0 0.0
      %989 = vmatpush1.msra.mxu0 0.0
      %990 = vmatprep.subr.mxu0 0.0
      %991 = vmatpush1.msra.mxu0 0.0
      %992 = vmatprep.subr.mxu0 0.0
      %993 = vmatpush1.msra.mxu0 0.0
      %994 = vmatprep.subr.mxu0 0.0
      %995 = vmatpush1.msra.mxu0 0.0
      %996 = vmatprep.subr.mxu0 0.0
      %997 = vmatpush1.msra.mxu0 0.0
      %998 = vmatprep.subr.mxu0 0.0
      %999 = vmatpush1.msra.mxu0 0.0
      %1000 = vmatprep.subr.mxu0 0.0
      %1001 = vmatpush1.msra.mxu0 0.0
      %1002 = vmatprep.subr.mxu0 0.0
      %1003 = vmatpush1.msra.mxu0 0.0
      %1004 = vmatprep.subr.mxu0 0.0
      %1005 = vmatpush1.msra.mxu0 0.0
      %1006 = vmatprep.subr.mxu0 0.0
      %1007 = vmatpush1.msra.mxu0 0.0
      %1008 = vmatprep.subr.mxu0 0.0
      %1009 = vmatpush1.msra.mxu0 0.0
      %1010 = vmatprep.subr.mxu0 %v905
      %1011 = vmatpush1.msra.mxu0 %v904
      %1012 = vmatprep.subr.mxu0 %v901
      %1013 = vmatpush1.msra.mxu0 %v900
      %1014 = vmatprep.subr.mxu0 %v897
      %1015 = vmatpush1.msra.mxu0 %v896
      %1016 = vmatprep.subr.mxu0 %v893
      %1017 = vmatpush1.msra.mxu0 %v892
      %1018 = vmatprep.subr.mxu0 0.0
      %1019 = vmatpush2.msra.mxu0 0.0
      %1020 = vmatprep.subr.mxu0 0.0
      %1021 = vmatpush2.msra.mxu0 0.0
      %1022 = vmatprep.subr.mxu0 0.0
      %1023 = vmatpush2.msra.mxu0 0.0
      %1024 = vmatprep.subr.mxu0 0.0
      %1025 = vmatpush2.msra.mxu0 0.0
      %1026 = vmatprep.subr.mxu0 0.0
      %1027 = vmatpush2.msra.mxu0 0.0
      %1028 = vmatprep.subr.mxu0 0.0
      %1029 = vmatpush2.msra.mxu0 0.0
      %1030 = vmatprep.subr.mxu0 0.0
      %1031 = vmatpush2.msra.mxu0 0.0
      %1032 = vmatprep.subr.mxu0 0.0
      %1033 = vmatpush2.msra.mxu0 0.0
      %1034 = vmatprep.subr.mxu0 0.0
      %1035 = vmatpush2.msra.mxu0 0.0
      %1036 = vmatprep.subr.mxu0 0.0
      %1037 = vmatpush2.msra.mxu0 0.0
      %1038 = vmatprep.subr.mxu0 0.0
      %1039 = vmatpush2.msra.mxu0 0.0
      %1040 = vmatprep.subr.mxu0 0.0
      %1041 = vmatpush2.msra.mxu0 0.0
      %1042 = vmatprep.subr.mxu0 0.0
      %1043 = vmatpush2.msra.mxu0 0.0
      %1044 = vmatprep.subr.mxu0 0.0
      %1045 = vmatpush2.msra.mxu0 0.0
      %1046 = vmatprep.subr.mxu0 0.0
      %1047 = vmatpush2.msra.mxu0 0.0
      %1048 = vmatprep.subr.mxu0 0.0
      %1049 = vmatpush2.msra.mxu0 0.0
      %1050 = vmatprep.mubr.f32.mxu0 0.0
      %1051 = vmatmul.mubr.f32.gmra.mxu0 %v913
      %v1052 = vpop.f32.mrf.mxu0
      %v1053 = vadd.f32 %v910, %v1052
      %v1054 = vpop.f32.mrf.mxu0
      %v1055 = vadd.f32 %v910, %v1054
      %1056 = vdwg.mxu0
      %v1057 = vsub.f32 %v982, 1.0
      %v1058 = vsub.f32 %v984, 1.0
      %v1059 = vsub.f32 %v1053, 1.0
      %v1060 = vsub.f32 %v1055, 1.0
      %v1061 = vmax.f32 %v1057, 0.0
      %v1062 = vmax.f32 %v1058, 0.0
      %v1063 = vmax.f32 %v1059, 0.0
      %v1064 = vmax.f32 %v1060, 0.0
      %v1065 = vld [vmem:[%s5] sm:$0xff]
      %1067 = vset.pattern.permute.xlu0 0
      %1068 = vperm.xlu0 %1067, %v1065
      %v1069 = vpop.permute.xlu0 %1068
      %v1071 = vmul.f32 %v1061, %v1069
      %v1072 = vmul.f32 %v1062, %v1069
      %v1073 = vmul.f32 %v1063, %v1069
      %v1074 = vmul.f32 %v1064, %v1069
      %v1075 = vld [vmem:[%s6] sm:$0xff]
      %1077 = vset.pattern.permute.xlu0 0
      %1078 = vperm.xlu0 %1077, %v1075
      %v1079 = vpop.permute.xlu0 %1078
      %v1081 = vadd.f32 %v1071, %v1079
      %v1082 = vadd.f32 %v1072, %v1079
      %v1083 = vadd.f32 %v1073, %v1079
      %v1084 = vadd.f32 %v1074, %v1079
      %v1085 = vmax.f32 %v1081, 0.0
      %v1086 = vmax.f32 %v1082, 0.0
      %v1087 = vmax.f32 %v1083, 0.0
      %v1088 = vmax.f32 %v1084, 0.0
      %1089 = vst [vmem:[%s403] sm:$0xff] %v1085
      %1090 = vst [vmem:[%s403 + $0x8] sm:$0xff] %v1086
      %1091 = vst [vmem:[%s403 + $0x10] sm:$0xff] %v1087
      %1092 = vst [vmem:[%s403 + $0x18] sm:$0xff] %v1088
      %s1093 = smul.u32 4, %s23
      %p1094 = scmp.lt.s32.totalorder %s22, 0
      %s1095 = scalar_select %p1094, %s22, 0
      %p1096 = scmp.lt.s32.totalorder %s1093, 7
      %s1097 = scalar_select %p1096, %s1093, 7
      %s1098 = smul.addr %s1095, 8
      %s1099 = sadd.s32 %s1097, %s1098
      %s1100 = smul.addr %s1099, 8
      %s1101 = scalar_lea.vmem %s7, %s1100
      // Predicated region
      $region49: #{model_forward.3} parent=47 // pred_check
        %p1102 = pneg %p220
      $region50: #{model_forward.3} parent=47 // pred_check_branch
        %1104 = sbr.rel (%p1102) target = $region52
      $region51: #{model_forward.3} parent=47 // pred_region
        %s1105 = smul.u32 4, %s23
      $region52: #{model_forward.3} parent=47 // pred_fallthru
        _
    $region48: #{model_forward.3} parent=5 // pred_fallthru
      _
    %p1106 = scmp.le.s32.totalorder 2, %s13
    // Predicated region
    $region53: #{model_forward.3} parent=5 // pred_check
      %p1107 = pneg %p1106
    $region54: #{model_forward.3} parent=5 // pred_check_branch
      %1109 = sbr.rel (%p1107) target = $region56
    $region55: #{model_forward.3} parent=5 // pred_region
      %s1110 = ssub.s32 %s13, 2
      // Predicated region
      $region57: #{model_forward.3} parent=55 // pred_check
        %p1111 = pneg %p226
      $region58: #{model_forward.3} parent=55 // pred_check_branch
        %1113 = sbr.rel (%p1111) target = $region60
      $region59: #{model_forward.3} parent=55 // pred_region
        %s1114 = smul.u32 4, %s25
        %p1115 = scmp.lt.s32.totalorder %s24, 0
        %s1116 = scalar_select %p1115, %s24, 0
        %p1117 = scmp.lt.s32.totalorder %s1114, 7
        %s1118 = scalar_select %p1117, %s1114, 7
        %s1119 = smul.addr %s1116, 8
        %s1120 = sadd.s32 %s1118, %s1119
        %s1121 = smul.addr %s1120, 8
        %s1122 = scalar_lea.vmem %s7, %s1121
      $region60: #{model_forward.3} parent=55 // pred_fallthru
        _
    $region56: #{model_forward.3} parent=5 // pred_fallthru
      _
  $region6: #{model_forward.3} parent=0 // loop_footer
    %s17 = sadd.s32 1, %s13
  $region7: #{model_forward.3} parent=0 // loop_footer_branch
    %12 = sbr.rel target = $region3
  $region8: #{model_forward.3} parent=0 // loop_exit
    _

</llo_original>
